<compile_context>
chip_gen: v7x
topology: tpu7x:2x2x1
jax: 0.10.0
libtpu: 0.0.40
codegen_flags: <defaults>
</compile_context>

<pallas_src>
import functools
import math

import jax
import jax.numpy as jnp
from jax.experimental import pallas as pl
from jax.experimental.pallas import tpu as pltpu


def _conv_kernel(wk_ref, tw_ref, mw_ref, b_ref, xm_ref, xh_ref, o_ref, x_scr,
                 *, kernel_length, n_fold, use_mxu):
    # Block shapes:
    #   wk_ref : (K, C_out, C_in)    folded per-tap weights   (VPU path)
    #   tw_ref : (K, C_out, 1)       temporal weights         (MXU path)
    #   mw_ref : (C_out, C_in)       channel-mixing weights   (MXU path)
    #   b_ref  : (C_out, 1)          bias
    #   xm_ref : (Nb, C_in, TL)      main input window of this time tile
    #   xh_ref : (Nb, C_in, HALO)    next HALO samples (covers the K-1 halo)
    #   o_ref  : (Nb, C_out, TL)     output tile (lane-dense, TL % 128 == 0)
    #   x_scr  : (Nb, R, TL+HALO)    VMEM scratch; R = C_in (VPU) / C_out (MXU)
    _, c_in, tl = xm_ref.shape
    halo = xh_ref.shape[-1]
    c_out = o_ref.shape[1]
    bias = b_ref[...]                                        # (C_out, 1)

    if use_mxu:
        mw = mw_ref[...]                                     # (C_out, C_in)
        tw = tw_ref[...]                                     # (K, C_out, 1)
    else:
        wk = wk_ref[...]                                     # (K, C_out, C_in)

    for b in range(n_fold):                                  # static, small
        if use_mxu:
            # Channel mix once on the MXU; stage the mixed window so the K
            # temporal taps are re-aligned on the load path (shifted pl.ds
            # loads), not via cross-lane shuffles on the VALU.
            x_scr[b, :, pl.ds(0, tl)] = jnp.dot(
                mw, xm_ref[b], preferred_element_type=jnp.float32)
            x_scr[b, :, pl.ds(tl, halo)] = jnp.dot(
                mw, xh_ref[b], preferred_element_type=jnp.float32)
            acc = tw[0] * x_scr[b, :, pl.ds(0, tl)]
            for kk in range(1, kernel_length):
                acc = acc + tw[kk] * x_scr[b, :, pl.ds(kk, tl)]
        else:
            # Tiny channels: a (C_out x C_in)@(C_in x TL) matmul would be
            # almost all MXU padding.  Stage the contiguous input window
            # (only C_in rows) once, then accumulate folded per-tap weights
            # with VPU broadcast-MACs -- no (C_out, TL+HALO) scratch round
            # trip and a single output store per tile.
            x_scr[b, :, pl.ds(0, tl)] = xm_ref[b]
            x_scr[b, :, pl.ds(tl, halo)] = xh_ref[b]
            acc = jnp.zeros((c_out, tl), jnp.float32)
            for kk in range(kernel_length):                  # static K
                xk = x_scr[b, :, pl.ds(kk, tl)]              # (C_in, TL)
                for i in range(c_in):                        # static C_in
                    acc = acc + wk[kk, :, i:i + 1] * xk[i:i + 1, :]
        o_ref[b] = (acc + bias).astype(o_ref.dtype)


def separate_temporal_channel_conv(x, temporal_weights, mix_weights, bias):
    """x: (N, C_in, L) float32.  Returns conv1d output (N, C_out, L - K + 1)."""
    n, c_in, length = x.shape
    c_out, klen = temporal_weights.shape
    assert mix_weights.shape == (c_out, c_in)
    t_out = length - klen + 1
    assert t_out > 0, "input too short for kernel_length"

    # ----- generation-aware hardware budgets --------------------------------
    vmem_cap = 64 << 20      # conservative default = v7x (64 MiB per core)
    mxu_width = 256          # v6e/v7x MXU; v5e is 128
    try:
        info = pltpu.get_tpu_info()
        vmem_cap = int(info.vmem_capacity_bytes)
        mxu_width = int(getattr(info, "mxu_column_size", mxu_width))
    except Exception:
        pass
    # Scoped VMEM limit: ~3/4 of physical, capped at 100 MiB.  v7x (64 MiB)
    # keeps headroom for Mosaic internal scratch; v5e/v6e (128 MiB) get ~96 MiB.
    vmem_limit = int(max(32 << 20, min(100 << 20, (vmem_cap * 3) // 4)))
    ws_budget = vmem_limit // 2          # target working set for the blocks

    # MXU mix-first only when both channel counts fill a useful fraction of
    # the MXU array; otherwise the VPU folded-weight path.
    use_mxu = (c_in >= mxu_width // 8) and (c_out >= mxu_width // 8)

    # ----- tiling ------------------------------------------------------------
    halo = 128 * pl.cdiv(max(klen - 1, 1), 128)      # 128-aligned halo >= K-1
    # Fold several batches per grid step when C_in underfills the 8 sublanes.
    nb = 1 if use_mxu else max(1, min(n, 8 // max(c_in, 1)))
    scr_rows = c_out if use_mxu else c_in
    t_out_128 = 128 * pl.cdiv(t_out, 128)

    def per_lane_bytes(nb_):
        # double-buffered main-input & output blocks + single-buffered scratch
        return 4 * (2 * nb_ * c_in + 2 * nb_ * c_out + nb_ * scr_rows)

    def derive(nb_):
        tl_ = min(ws_budget // per_lane_bytes(nb_), 32768, t_out_128)
        tl_ = max(halo, (tl_ // halo) * halo)
        t_pad_ = tl_ * pl.cdiv(t_out, tl_)
        return tl_, t_pad_, t_pad_ // tl_

    tl, t_pad, n_t_tiles = derive(nb)
    n_groups = pl.cdiv(n, nb)
    # Keep >= 2 grid steps when the problem allows, so the 'parallel' grid can
    # shard across v7x's two TensorCores (megacore on earlier chips).
    while n_groups * n_t_tiles < 2 and nb > 1:
        nb //= 2
        tl, t_pad, n_t_tiles = derive(nb)
        n_groups = pl.cdiv(n, nb)
    if n_groups * n_t_tiles < 2 and tl > halo:
        tl = max(halo, halo * pl.cdiv(pl.cdiv(t_out, 2), halo))
        t_pad = tl * pl.cdiv(t_out, tl)
        n_t_tiles = t_pad // tl
    assert tl % halo == 0, "time tile must stay a multiple of the halo block"

    # ----- operand prep ------------------------------------------------------
    # Padded batches / time columns only feed padded outputs (sliced off).
    n_pad = nb * n_groups
    x_pad = jnp.pad(x, ((0, n_pad - n), (0, 0), (0, t_pad + halo - length)))
    tw3 = jnp.transpose(temporal_weights)[:, :, None]             # (K, C_out, 1)
    wk = tw3 * mix_weights[None, :, :]                            # (K, C_out, C_in)
    bias2d = bias.reshape(c_out, 1)

    kernel = functools.partial(_conv_kernel, kernel_length=klen,
                               n_fold=nb, use_mxu=use_mxu)
    halo_blocks = tl // halo

    out_full = pl.pallas_call(
        kernel,
        out_shape=jax.ShapeDtypeStruct((n_pad, c_out, t_pad), x.dtype),
        grid_spec=pltpu.PrefetchScalarGridSpec(
            num_scalar_prefetch=0,
            grid=(n_groups, n_t_tiles),
            in_specs=[
                pl.BlockSpec((klen, c_out, c_in), lambda g, j: (0, 0, 0)),
                pl.BlockSpec((klen, c_out, 1), lambda g, j: (0, 0, 0)),
                pl.BlockSpec((c_out, c_in), lambda g, j: (0, 0)),
                pl.BlockSpec((c_out, 1), lambda g, j: (0, 0)),
                # main window: samples [j*TL, j*TL + TL)
                pl.BlockSpec((nb, c_in, tl), lambda g, j: (g, 0, j)),
                # halo window: samples [(j+1)*TL, (j+1)*TL + HALO)
                pl.BlockSpec((nb, c_in, halo),
                             lambda g, j: (g, 0, (j + 1) * halo_blocks)),
            ],
            out_specs=pl.BlockSpec((nb, c_out, tl), lambda g, j: (g, 0, j)),
            scratch_shapes=[pltpu.VMEM((nb, scr_rows, tl + halo), jnp.float32)],
        ),
        compiler_params=pltpu.CompilerParams(
            dimension_semantics=("parallel", "parallel"),
            vmem_limit_bytes=vmem_limit),
    )(wk, tw3, mix_weights, bias2d, x_pad, x_pad)

    return out_full[:n, :, :t_out]


def init_params(key, in_channels, out_channels, kernel_length):
    """Deterministic re-implementation of the module's __init__."""
    k_t, k_m = jax.random.split(key)
    bound_t = 1.0 / math.sqrt(kernel_length)
    temporal = jax.random.uniform(
        k_t, (out_channels, kernel_length), jnp.float32, -bound_t, bound_t)
    bound_m = 1.0 / math.sqrt(in_channels)
    mix = jax.random.uniform(
        k_m, (out_channels, in_channels), jnp.float32, -bound_m, bound_m)

    conv_weight = temporal[:, None, :] * mix[:, :, None]
    desired_std = 2.0 / math.sqrt(in_channels * kernel_length) / math.sqrt(12.0)
    factor = desired_std / jnp.std(conv_weight, ddof=1)  # torch std is unbiased
    scale = jnp.sqrt(factor)
    temporal = temporal * scale
    mix = mix * scale
    bias = jnp.zeros((out_channels,), jnp.float32)
    return temporal, mix, bias


def reference_forward(x, temporal, mix, bias):
    """Plain-JAX reference of nn.functional.conv1d with the factored weight."""
    c_out, k = temporal.shape
    t_out = x.shape[-1] - k + 1
    w = temporal[:, None, :] * mix[:, :, None]  # (C_out, C_in, K)
    out = jnp.broadcast_to(bias[None, :, None],
                           (x.shape[0], c_out, t_out)).astype(jnp.float32)
    for kk in range(k):
        out = out + jnp.einsum('nil,oi->nol', x[:, :, kk:kk + t_out], w[:, :, kk],
                               precision=jax.lax.Precision.HIGHEST)
    return out


if __name__ == "__main__":
    key = jax.random.PRNGKey(0)

    # Case 1: tiny channels -> folded-weight VPU path (exercises batch folding,
    # batch padding N=3 -> 4, and time padding).
    n1, ci1, co1, k1, l1 = 3, 4, 8, 5, 16
    key, kp, kx = jax.random.split(key, 3)
    t1, m1, b1 = init_params(kp, ci1, co1, k1)
    x1 = jax.random.normal(kx, (n1, ci1, l1), jnp.float32)
    y1 = jax.block_until_ready(separate_temporal_channel_conv(x1, t1, m1, b1))
    r1 = reference_forward(x1, t1, m1, b1)
    assert y1.shape == (n1, co1, l1 - k1 + 1)
    assert jnp.allclose(y1, r1, atol=1e-4, rtol=1e-4), (
        f"VPU path max abs err {jnp.max(jnp.abs(y1 - r1))}")

    # Case 2: larger channels -> MXU mix-first path.  Tolerance is looser
    # because the in-kernel f32 matmul may use default-precision bf16 passes
    # on the MXU, unlike the HIGHEST-precision reference.
    n2, ci2, co2, k2, l2 = 2, 32, 32, 7, 300
    key, kp, kx = jax.random.split(key, 3)
    t2, m2, b2 = init_params(kp, ci2, co2, k2)
    x2 = jax.random.normal(kx, (n2, ci2, l2), jnp.float32)
    y2 = jax.block_until_ready(separate_temporal_channel_conv(x2, t2, m2, b2))
    r2 = reference_forward(x2, t2, m2, b2)
    assert y2.shape == (n2, co2, l2 - k2 + 1)
    assert jnp.allclose(y2, r2, atol=1e-2, rtol=1e-2), (
        f"MXU path max abs err {jnp.max(jnp.abs(y2 - r2))}")

    print("KERNEL_OK")
</pallas_src>

<mosaic_0001>
module attributes {stable_mosaic.version = 11 : i64} {
  func.func @_conv_kernel(%arg0: i32, %arg1: i32, %arg2: memref<5x8x4xf32, #tpu.memory_space<vmem>>, %arg3: memref<5x8x1xf32, #tpu.memory_space<vmem>>, %arg4: memref<8x4xf32, #tpu.memory_space<vmem>>, %arg5: memref<8x1xf32, #tpu.memory_space<vmem>>, %arg6: memref<2x4x128xf32, #tpu.memory_space<vmem>>, %arg7: memref<2x4x128xf32, #tpu.memory_space<vmem>>, %arg8: memref<2x8x128xf32, #tpu.memory_space<vmem>>, %arg9: memref<2x4x256xf32, #tpu.memory_space<vmem>>) attributes {dimension_semantics = [#tpu.dimension_semantics<parallel>, #tpu.dimension_semantics<parallel>], iteration_bounds = array<i64: 2, 1>, scalar_prefetch = 0 : i64, scratch_operands = 1 : i64, tpu.core_type = #tpu.core_type<tc>, window_params = [{pipeline_mode = #tpu.pipeline_mode<synchronous>, transform_indices = @transform_0, window_bounds = array<i64: 5, 8, 4>}, {pipeline_mode = #tpu.pipeline_mode<synchronous>, transform_indices = @transform_1, window_bounds = array<i64: 5, 8, 1>}, {pipeline_mode = #tpu.pipeline_mode<synchronous>, transform_indices = @transform_2, window_bounds = array<i64: 8, 4>}, {pipeline_mode = #tpu.pipeline_mode<synchronous>, transform_indices = @transform_3, window_bounds = array<i64: 8, 1>}, {transform_indices = @transform_4, window_bounds = array<i64: 2, 4, 128>}, {transform_indices = @transform_5, window_bounds = array<i64: 2, 4, 128>}, {transform_indices = @transform_6, window_bounds = array<i64: 2, 8, 128>}]} {
    %c0 = arith.constant 0 : index
    %c0_0 = arith.constant 0 : index
    %0 = vector.load %arg5[%c0, %c0_0] : memref<8x1xf32, #tpu.memory_space<vmem>>, vector<8x1xf32>
    %c0_1 = arith.constant 0 : index
    %c0_2 = arith.constant 0 : index
    %c0_3 = arith.constant 0 : index
    %1 = vector.load %arg2[%c0_1, %c0_2, %c0_3] : memref<5x8x4xf32, #tpu.memory_space<vmem>>, vector<5x8x4xf32>
    %c0_4 = arith.constant 0 : index
    %c0_5 = arith.constant 0 : index
    %c0_6 = arith.constant 0 : index
    %2 = vector.load %arg6[%c0_4, %c0_5, %c0_6] : memref<2x4x128xf32, #tpu.memory_space<vmem>>, vector<1x4x128xf32>
    %3 = vector.shape_cast %2 : vector<1x4x128xf32> to vector<4x128xf32>
    %c0_7 = arith.constant 0 : index
    %c0_8 = arith.constant 0 : index
    %c0_9 = arith.constant 0 : index
    %4 = vector.load %arg9[%c0_7, %c0_8, %c0_9] : memref<2x4x256xf32, #tpu.memory_space<vmem>>, vector<1x4x128xf32>
    %5 = vector.shape_cast %4 : vector<1x4x128xf32> to vector<4x128xf32>
    %6 = vector.shape_cast %3 : vector<4x128xf32> to vector<1x4x128xf32>
    tpu.vector_store %arg9[%c0_7, %c0_8, %c0_9], %6 {strides = array<i32>} : memref<2x4x256xf32, #tpu.memory_space<vmem>>, vector<1x4x128xf32>,
    %c0_10 = arith.constant 0 : index
    %c0_11 = arith.constant 0 : index
    %c0_12 = arith.constant 0 : index
    %7 = vector.load %arg7[%c0_10, %c0_11, %c0_12] : memref<2x4x128xf32, #tpu.memory_space<vmem>>, vector<1x4x128xf32>
    %8 = vector.shape_cast %7 : vector<1x4x128xf32> to vector<4x128xf32>
    %c0_13 = arith.constant 0 : index
    %c0_14 = arith.constant 0 : index
    %c128 = arith.constant 128 : index
    %9 = vector.load %arg9[%c0_13, %c0_14, %c128] : memref<2x4x256xf32, #tpu.memory_space<vmem>>, vector<1x4x128xf32>
    %10 = vector.shape_cast %9 : vector<1x4x128xf32> to vector<4x128xf32>
    %11 = vector.shape_cast %8 : vector<4x128xf32> to vector<1x4x128xf32>
    tpu.vector_store %arg9[%c0_13, %c0_14, %c128], %11 {strides = array<i32>} : memref<2x4x256xf32, #tpu.memory_space<vmem>>, vector<1x4x128xf32>,
    %cst = arith.constant 0.000000e+00 : f32
    %12 = vector.broadcast %cst : f32 to vector<8x128xf32>
    %c0_15 = arith.constant 0 : index
    %c0_16 = arith.constant 0 : index
    %c0_17 = arith.constant 0 : index
    %13 = vector.load %arg9[%c0_15, %c0_16, %c0_17] : memref<2x4x256xf32, #tpu.memory_space<vmem>>, vector<1x4x128xf32>
    %14 = vector.shape_cast %13 : vector<1x4x128xf32> to vector<4x128xf32>
    %15 = vector.extract_strided_slice %1 {offsets = [0, 0, 0], sizes = [1, 8, 1], strides = [1, 1, 1]} : vector<5x8x4xf32> to vector<1x8x1xf32>
    %16 = vector.shape_cast %15 : vector<1x8x1xf32> to vector<8x1xf32>
    %17 = vector.extract_strided_slice %14 {offsets = [0, 0], sizes = [1, 128], strides = [1, 1]} : vector<4x128xf32> to vector<1x128xf32>
    %18 = vector.broadcast %16 : vector<8x1xf32> to vector<8x128xf32>
    %19 = vector.broadcast %17 : vector<1x128xf32> to vector<8x128xf32>
    %20 = arith.mulf %18, %19 : vector<8x128xf32>
    %21 = arith.addf %12, %20 : vector<8x128xf32>
    %22 = vector.extract_strided_slice %1 {offsets = [0, 0, 1], sizes = [1, 8, 1], strides = [1, 1, 1]} : vector<5x8x4xf32> to vector<1x8x1xf32>
    %23 = vector.shape_cast %22 : vector<1x8x1xf32> to vector<8x1xf32>
    %24 = vector.extract_strided_slice %14 {offsets = [1, 0], sizes = [1, 128], strides = [1, 1]} : vector<4x128xf32> to vector<1x128xf32>
    %25 = vector.broadcast %23 : vector<8x1xf32> to vector<8x128xf32>
    %26 = vector.broadcast %24 : vector<1x128xf32> to vector<8x128xf32>
    %27 = arith.mulf %25, %26 : vector<8x128xf32>
    %28 = arith.addf %21, %27 : vector<8x128xf32>
    %29 = vector.extract_strided_slice %1 {offsets = [0, 0, 2], sizes = [1, 8, 1], strides = [1, 1, 1]} : vector<5x8x4xf32> to vector<1x8x1xf32>
    %30 = vector.shape_cast %29 : vector<1x8x1xf32> to vector<8x1xf32>
    %31 = vector.extract_strided_slice %14 {offsets = [2, 0], sizes = [1, 128], strides = [1, 1]} : vector<4x128xf32> to vector<1x128xf32>
    %32 = vector.broadcast %30 : vector<8x1xf32> to vector<8x128xf32>
    %33 = vector.broadcast %31 : vector<1x128xf32> to vector<8x128xf32>
    %34 = arith.mulf %32, %33 : vector<8x128xf32>
    %35 = arith.addf %28, %34 : vector<8x128xf32>
    %36 = vector.extract_strided_slice %1 {offsets = [0, 0, 3], sizes = [1, 8, 1], strides = [1, 1, 1]} : vector<5x8x4xf32> to vector<1x8x1xf32>
    %37 = vector.shape_cast %36 : vector<1x8x1xf32> to vector<8x1xf32>
    %38 = vector.extract_strided_slice %14 {offsets = [3, 0], sizes = [1, 128], strides = [1, 1]} : vector<4x128xf32> to vector<1x128xf32>
    %39 = vector.broadcast %37 : vector<8x1xf32> to vector<8x128xf32>
    %40 = vector.broadcast %38 : vector<1x128xf32> to vector<8x128xf32>
    %41 = arith.mulf %39, %40 : vector<8x128xf32>
    %42 = arith.addf %35, %41 : vector<8x128xf32>
    %c0_18 = arith.constant 0 : index
    %c0_19 = arith.constant 0 : index
    %c1 = arith.constant 1 : index
    %43 = vector.load %arg9[%c0_18, %c0_19, %c1] : memref<2x4x256xf32, #tpu.memory_space<vmem>>, vector<1x4x128xf32>
    %44 = vector.shape_cast %43 : vector<1x4x128xf32> to vector<4x128xf32>
    %45 = vector.extract_strided_slice %1 {offsets = [1, 0, 0], sizes = [1, 8, 1], strides = [1, 1, 1]} : vector<5x8x4xf32> to vector<1x8x1xf32>
    %46 = vector.shape_cast %45 : vector<1x8x1xf32> to vector<8x1xf32>
    %47 = vector.extract_strided_slice %44 {offsets = [0, 0], sizes = [1, 128], strides = [1, 1]} : vector<4x128xf32> to vector<1x128xf32>
    %48 = vector.broadcast %46 : vector<8x1xf32> to vector<8x128xf32>
    %49 = vector.broadcast %47 : vector<1x128xf32> to vector<8x128xf32>
    %50 = arith.mulf %48, %49 : vector<8x128xf32>
    %51 = arith.addf %42, %50 : vector<8x128xf32>
    %52 = vector.extract_strided_slice %1 {offsets = [1, 0, 1], sizes = [1, 8, 1], strides = [1, 1, 1]} : vector<5x8x4xf32> to vector<1x8x1xf32>
    %53 = vector.shape_cast %52 : vector<1x8x1xf32> to vector<8x1xf32>
    %54 = vector.extract_strided_slice %44 {offsets = [1, 0], sizes = [1, 128], strides = [1, 1]} : vector<4x128xf32> to vector<1x128xf32>
    %55 = vector.broadcast %53 : vector<8x1xf32> to vector<8x128xf32>
    %56 = vector.broadcast %54 : vector<1x128xf32> to vector<8x128xf32>
    %57 = arith.mulf %55, %56 : vector<8x128xf32>
    %58 = arith.addf %51, %57 : vector<8x128xf32>
    %59 = vector.extract_strided_slice %1 {offsets = [1, 0, 2], sizes = [1, 8, 1], strides = [1, 1, 1]} : vector<5x8x4xf32> to vector<1x8x1xf32>
    %60 = vector.shape_cast %59 : vector<1x8x1xf32> to vector<8x1xf32>
    %61 = vector.extract_strided_slice %44 {offsets = [2, 0], sizes = [1, 128], strides = [1, 1]} : vector<4x128xf32> to vector<1x128xf32>
    %62 = vector.broadcast %60 : vector<8x1xf32> to vector<8x128xf32>
    %63 = vector.broadcast %61 : vector<1x128xf32> to vector<8x128xf32>
    %64 = arith.mulf %62, %63 : vector<8x128xf32>
    %65 = arith.addf %58, %64 : vector<8x128xf32>
    %66 = vector.extract_strided_slice %1 {offsets = [1, 0, 3], sizes = [1, 8, 1], strides = [1, 1, 1]} : vector<5x8x4xf32> to vector<1x8x1xf32>
    %67 = vector.shape_cast %66 : vector<1x8x1xf32> to vector<8x1xf32>
    %68 = vector.extract_strided_slice %44 {offsets = [3, 0], sizes = [1, 128], strides = [1, 1]} : vector<4x128xf32> to vector<1x128xf32>
    %69 = vector.broadcast %67 : vector<8x1xf32> to vector<8x128xf32>
    %70 = vector.broadcast %68 : vector<1x128xf32> to vector<8x128xf32>
    %71 = arith.mulf %69, %70 : vector<8x128xf32>
    %72 = arith.addf %65, %71 : vector<8x128xf32>
    %c0_20 = arith.constant 0 : index
    %c0_21 = arith.constant 0 : index
    %c2 = arith.constant 2 : index
    %73 = vector.load %arg9[%c0_20, %c0_21, %c2] : memref<2x4x256xf32, #tpu.memory_space<vmem>>, vector<1x4x128xf32>
    %74 = vector.shape_cast %73 : vector<1x4x128xf32> to vector<4x128xf32>
    %75 = vector.extract_strided_slice %1 {offsets = [2, 0, 0], sizes = [1, 8, 1], strides = [1, 1, 1]} : vector<5x8x4xf32> to vector<1x8x1xf32>
    %76 = vector.shape_cast %75 : vector<1x8x1xf32> to vector<8x1xf32>
    %77 = vector.extract_strided_slice %74 {offsets = [0, 0], sizes = [1, 128], strides = [1, 1]} : vector<4x128xf32> to vector<1x128xf32>
    %78 = vector.broadcast %76 : vector<8x1xf32> to vector<8x128xf32>
    %79 = vector.broadcast %77 : vector<1x128xf32> to vector<8x128xf32>
    %80 = arith.mulf %78, %79 : vector<8x128xf32>
    %81 = arith.addf %72, %80 : vector<8x128xf32>
    %82 = vector.extract_strided_slice %1 {offsets = [2, 0, 1], sizes = [1, 8, 1], strides = [1, 1, 1]} : vector<5x8x4xf32> to vector<1x8x1xf32>
    %83 = vector.shape_cast %82 : vector<1x8x1xf32> to vector<8x1xf32>
    %84 = vector.extract_strided_slice %74 {offsets = [1, 0], sizes = [1, 128], strides = [1, 1]} : vector<4x128xf32> to vector<1x128xf32>
    %85 = vector.broadcast %83 : vector<8x1xf32> to vector<8x128xf32>
    %86 = vector.broadcast %84 : vector<1x128xf32> to vector<8x128xf32>
    %87 = arith.mulf %85, %86 : vector<8x128xf32>
    %88 = arith.addf %81, %87 : vector<8x128xf32>
    %89 = vector.extract_strided_slice %1 {offsets = [2, 0, 2], sizes = [1, 8, 1], strides = [1, 1, 1]} : vector<5x8x4xf32> to vector<1x8x1xf32>
    %90 = vector.shape_cast %89 : vector<1x8x1xf32> to vector<8x1xf32>
    %91 = vector.extract_strided_slice %74 {offsets = [2, 0], sizes = [1, 128], strides = [1, 1]} : vector<4x128xf32> to vector<1x128xf32>
    %92 = vector.broadcast %90 : vector<8x1xf32> to vector<8x128xf32>
    %93 = vector.broadcast %91 : vector<1x128xf32> to vector<8x128xf32>
    %94 = arith.mulf %92, %93 : vector<8x128xf32>
    %95 = arith.addf %88, %94 : vector<8x128xf32>
    %96 = vector.extract_strided_slice %1 {offsets = [2, 0, 3], sizes = [1, 8, 1], strides = [1, 1, 1]} : vector<5x8x4xf32> to vector<1x8x1xf32>
    %97 = vector.shape_cast %96 : vector<1x8x1xf32> to vector<8x1xf32>
    %98 = vector.extract_strided_slice %74 {offsets = [3, 0], sizes = [1, 128], strides = [1, 1]} : vector<4x128xf32> to vector<1x128xf32>
    %99 = vector.broadcast %97 : vector<8x1xf32> to vector<8x128xf32>
    %100 = vector.broadcast %98 : vector<1x128xf32> to vector<8x128xf32>
    %101 = arith.mulf %99, %100 : vector<8x128xf32>
    %102 = arith.addf %95, %101 : vector<8x128xf32>
    %c0_22 = arith.constant 0 : index
    %c0_23 = arith.constant 0 : index
    %c3 = arith.constant 3 : index
    %103 = vector.load %arg9[%c0_22, %c0_23, %c3] : memref<2x4x256xf32, #tpu.memory_space<vmem>>, vector<1x4x128xf32>
    %104 = vector.shape_cast %103 : vector<1x4x128xf32> to vector<4x128xf32>
    %105 = vector.extract_strided_slice %1 {offsets = [3, 0, 0], sizes = [1, 8, 1], strides = [1, 1, 1]} : vector<5x8x4xf32> to vector<1x8x1xf32>
    %106 = vector.shape_cast %105 : vector<1x8x1xf32> to vector<8x1xf32>
    %107 = vector.extract_strided_slice %104 {offsets = [0, 0], sizes = [1, 128], strides = [1, 1]} : vector<4x128xf32> to vector<1x128xf32>
    %108 = vector.broadcast %106 : vector<8x1xf32> to vector<8x128xf32>
    %109 = vector.broadcast %107 : vector<1x128xf32> to vector<8x128xf32>
    %110 = arith.mulf %108, %109 : vector<8x128xf32>
    %111 = arith.addf %102, %110 : vector<8x128xf32>
    %112 = vector.extract_strided_slice %1 {offsets = [3, 0, 1], sizes = [1, 8, 1], strides = [1, 1, 1]} : vector<5x8x4xf32> to vector<1x8x1xf32>
    %113 = vector.shape_cast %112 : vector<1x8x1xf32> to vector<8x1xf32>
    %114 = vector.extract_strided_slice %104 {offsets = [1, 0], sizes = [1, 128], strides = [1, 1]} : vector<4x128xf32> to vector<1x128xf32>
    %115 = vector.broadcast %113 : vector<8x1xf32> to vector<8x128xf32>
    %116 = vector.broadcast %114 : vector<1x128xf32> to vector<8x128xf32>
    %117 = arith.mulf %115, %116 : vector<8x128xf32>
    %118 = arith.addf %111, %117 : vector<8x128xf32>
    %119 = vector.extract_strided_slice %1 {offsets = [3, 0, 2], sizes = [1, 8, 1], strides = [1, 1, 1]} : vector<5x8x4xf32> to vector<1x8x1xf32>
    %120 = vector.shape_cast %119 : vector<1x8x1xf32> to vector<8x1xf32>
    %121 = vector.extract_strided_slice %104 {offsets = [2, 0], sizes = [1, 128], strides = [1, 1]} : vector<4x128xf32> to vector<1x128xf32>
    %122 = vector.broadcast %120 : vector<8x1xf32> to vector<8x128xf32>
    %123 = vector.broadcast %121 : vector<1x128xf32> to vector<8x128xf32>
    %124 = arith.mulf %122, %123 : vector<8x128xf32>
    %125 = arith.addf %118, %124 : vector<8x128xf32>
    %126 = vector.extract_strided_slice %1 {offsets = [3, 0, 3], sizes = [1, 8, 1], strides = [1, 1, 1]} : vector<5x8x4xf32> to vector<1x8x1xf32>
    %127 = vector.shape_cast %126 : vector<1x8x1xf32> to vector<8x1xf32>
    %128 = vector.extract_strided_slice %104 {offsets = [3, 0], sizes = [1, 128], strides = [1, 1]} : vector<4x128xf32> to vector<1x128xf32>
    %129 = vector.broadcast %127 : vector<8x1xf32> to vector<8x128xf32>
    %130 = vector.broadcast %128 : vector<1x128xf32> to vector<8x128xf32>
    %131 = arith.mulf %129, %130 : vector<8x128xf32>
    %132 = arith.addf %125, %131 : vector<8x128xf32>
    %c0_24 = arith.constant 0 : index
    %c0_25 = arith.constant 0 : index
    %c4 = arith.constant 4 : index
    %133 = vector.load %arg9[%c0_24, %c0_25, %c4] : memref<2x4x256xf32, #tpu.memory_space<vmem>>, vector<1x4x128xf32>
    %134 = vector.shape_cast %133 : vector<1x4x128xf32> to vector<4x128xf32>
    %135 = vector.extract_strided_slice %1 {offsets = [4, 0, 0], sizes = [1, 8, 1], strides = [1, 1, 1]} : vector<5x8x4xf32> to vector<1x8x1xf32>
    %136 = vector.shape_cast %135 : vector<1x8x1xf32> to vector<8x1xf32>
    %137 = vector.extract_strided_slice %134 {offsets = [0, 0], sizes = [1, 128], strides = [1, 1]} : vector<4x128xf32> to vector<1x128xf32>
    %138 = vector.broadcast %136 : vector<8x1xf32> to vector<8x128xf32>
    %139 = vector.broadcast %137 : vector<1x128xf32> to vector<8x128xf32>
    %140 = arith.mulf %138, %139 : vector<8x128xf32>
    %141 = arith.addf %132, %140 : vector<8x128xf32>
    %142 = vector.extract_strided_slice %1 {offsets = [4, 0, 1], sizes = [1, 8, 1], strides = [1, 1, 1]} : vector<5x8x4xf32> to vector<1x8x1xf32>
    %143 = vector.shape_cast %142 : vector<1x8x1xf32> to vector<8x1xf32>
    %144 = vector.extract_strided_slice %134 {offsets = [1, 0], sizes = [1, 128], strides = [1, 1]} : vector<4x128xf32> to vector<1x128xf32>
    %145 = vector.broadcast %143 : vector<8x1xf32> to vector<8x128xf32>
    %146 = vector.broadcast %144 : vector<1x128xf32> to vector<8x128xf32>
    %147 = arith.mulf %145, %146 : vector<8x128xf32>
    %148 = arith.addf %141, %147 : vector<8x128xf32>
    %149 = vector.extract_strided_slice %1 {offsets = [4, 0, 2], sizes = [1, 8, 1], strides = [1, 1, 1]} : vector<5x8x4xf32> to vector<1x8x1xf32>
    %150 = vector.shape_cast %149 : vector<1x8x1xf32> to vector<8x1xf32>
    %151 = vector.extract_strided_slice %134 {offsets = [2, 0], sizes = [1, 128], strides = [1, 1]} : vector<4x128xf32> to vector<1x128xf32>
    %152 = vector.broadcast %150 : vector<8x1xf32> to vector<8x128xf32>
    %153 = vector.broadcast %151 : vector<1x128xf32> to vector<8x128xf32>
    %154 = arith.mulf %152, %153 : vector<8x128xf32>
    %155 = arith.addf %148, %154 : vector<8x128xf32>
    %156 = vector.extract_strided_slice %1 {offsets = [4, 0, 3], sizes = [1, 8, 1], strides = [1, 1, 1]} : vector<5x8x4xf32> to vector<1x8x1xf32>
    %157 = vector.shape_cast %156 : vector<1x8x1xf32> to vector<8x1xf32>
    %158 = vector.extract_strided_slice %134 {offsets = [3, 0], sizes = [1, 128], strides = [1, 1]} : vector<4x128xf32> to vector<1x128xf32>
    %159 = vector.broadcast %157 : vector<8x1xf32> to vector<8x128xf32>
    %160 = vector.broadcast %158 : vector<1x128xf32> to vector<8x128xf32>
    %161 = arith.mulf %159, %160 : vector<8x128xf32>
    %162 = arith.addf %155, %161 : vector<8x128xf32>
    %163 = vector.broadcast %0 : vector<8x1xf32> to vector<8x128xf32>
    %164 = arith.addf %162, %163 : vector<8x128xf32>
    %c0_26 = arith.constant 0 : index
    %c0_27 = arith.constant 0 : index
    %c0_28 = arith.constant 0 : index
    %165 = vector.load %arg8[%c0_26, %c0_27, %c0_28] : memref<2x8x128xf32, #tpu.memory_space<vmem>>, vector<1x8x128xf32>
    %166 = vector.shape_cast %165 : vector<1x8x128xf32> to vector<8x128xf32>
    %167 = vector.shape_cast %164 : vector<8x128xf32> to vector<1x8x128xf32>
    tpu.vector_store %arg8[%c0_26, %c0_27, %c0_28], %167 {strides = array<i32>} : memref<2x8x128xf32, #tpu.memory_space<vmem>>, vector<1x8x128xf32>,
    %c1_29 = arith.constant 1 : index
    %c0_30 = arith.constant 0 : index
    %c0_31 = arith.constant 0 : index
    %168 = vector.load %arg6[%c1_29, %c0_30, %c0_31] : memref<2x4x128xf32, #tpu.memory_space<vmem>>, vector<1x4x128xf32>
    %169 = vector.shape_cast %168 : vector<1x4x128xf32> to vector<4x128xf32>
    %c1_32 = arith.constant 1 : index
    %c0_33 = arith.constant 0 : index
    %c0_34 = arith.constant 0 : index
    %170 = vector.load %arg9[%c1_32, %c0_33, %c0_34] : memref<2x4x256xf32, #tpu.memory_space<vmem>>, vector<1x4x128xf32>
    %171 = vector.shape_cast %170 : vector<1x4x128xf32> to vector<4x128xf32>
    %172 = vector.shape_cast %169 : vector<4x128xf32> to vector<1x4x128xf32>
    tpu.vector_store %arg9[%c1_32, %c0_33, %c0_34], %172 {strides = array<i32>} : memref<2x4x256xf32, #tpu.memory_space<vmem>>, vector<1x4x128xf32>,
    %c1_35 = arith.constant 1 : index
    %c0_36 = arith.constant 0 : index
    %c0_37 = arith.constant 0 : index
    %173 = vector.load %arg7[%c1_35, %c0_36, %c0_37] : memref<2x4x128xf32, #tpu.memory_space<vmem>>, vector<1x4x128xf32>
    %174 = vector.shape_cast %173 : vector<1x4x128xf32> to vector<4x128xf32>
    %c1_38 = arith.constant 1 : index
    %c0_39 = arith.constant 0 : index
    %c128_40 = arith.constant 128 : index
    %175 = vector.load %arg9[%c1_38, %c0_39, %c128_40] : memref<2x4x256xf32, #tpu.memory_space<vmem>>, vector<1x4x128xf32>
    %176 = vector.shape_cast %175 : vector<1x4x128xf32> to vector<4x128xf32>
    %177 = vector.shape_cast %174 : vector<4x128xf32> to vector<1x4x128xf32>
    tpu.vector_store %arg9[%c1_38, %c0_39, %c128_40], %177 {strides = array<i32>} : memref<2x4x256xf32, #tpu.memory_space<vmem>>, vector<1x4x128xf32>,
    %cst_41 = arith.constant 0.000000e+00 : f32
    %178 = vector.broadcast %cst_41 : f32 to vector<8x128xf32>
    %c1_42 = arith.constant 1 : index
    %c0_43 = arith.constant 0 : index
    %c0_44 = arith.constant 0 : index
    %179 = vector.load %arg9[%c1_42, %c0_43, %c0_44] : memref<2x4x256xf32, #tpu.memory_space<vmem>>, vector<1x4x128xf32>
    %180 = vector.shape_cast %179 : vector<1x4x128xf32> to vector<4x128xf32>
    %181 = vector.extract_strided_slice %1 {offsets = [0, 0, 0], sizes = [1, 8, 1], strides = [1, 1, 1]} : vector<5x8x4xf32> to vector<1x8x1xf32>
    %182 = vector.shape_cast %181 : vector<1x8x1xf32> to vector<8x1xf32>
    %183 = vector.extract_strided_slice %180 {offsets = [0, 0], sizes = [1, 128], strides = [1, 1]} : vector<4x128xf32> to vector<1x128xf32>
    %184 = vector.broadcast %182 : vector<8x1xf32> to vector<8x128xf32>
    %185 = vector.broadcast %183 : vector<1x128xf32> to vector<8x128xf32>
    %186 = arith.mulf %184, %185 : vector<8x128xf32>
    %187 = arith.addf %178, %186 : vector<8x128xf32>
    %188 = vector.extract_strided_slice %1 {offsets = [0, 0, 1], sizes = [1, 8, 1], strides = [1, 1, 1]} : vector<5x8x4xf32> to vector<1x8x1xf32>
    %189 = vector.shape_cast %188 : vector<1x8x1xf32> to vector<8x1xf32>
    %190 = vector.extract_strided_slice %180 {offsets = [1, 0], sizes = [1, 128], strides = [1, 1]} : vector<4x128xf32> to vector<1x128xf32>
    %191 = vector.broadcast %189 : vector<8x1xf32> to vector<8x128xf32>
    %192 = vector.broadcast %190 : vector<1x128xf32> to vector<8x128xf32>
    %193 = arith.mulf %191, %192 : vector<8x128xf32>
    %194 = arith.addf %187, %193 : vector<8x128xf32>
    %195 = vector.extract_strided_slice %1 {offsets = [0, 0, 2], sizes = [1, 8, 1], strides = [1, 1, 1]} : vector<5x8x4xf32> to vector<1x8x1xf32>
    %196 = vector.shape_cast %195 : vector<1x8x1xf32> to vector<8x1xf32>
    %197 = vector.extract_strided_slice %180 {offsets = [2, 0], sizes = [1, 128], strides = [1, 1]} : vector<4x128xf32> to vector<1x128xf32>
    %198 = vector.broadcast %196 : vector<8x1xf32> to vector<8x128xf32>
    %199 = vector.broadcast %197 : vector<1x128xf32> to vector<8x128xf32>
    %200 = arith.mulf %198, %199 : vector<8x128xf32>
    %201 = arith.addf %194, %200 : vector<8x128xf32>
    %202 = vector.extract_strided_slice %1 {offsets = [0, 0, 3], sizes = [1, 8, 1], strides = [1, 1, 1]} : vector<5x8x4xf32> to vector<1x8x1xf32>
    %203 = vector.shape_cast %202 : vector<1x8x1xf32> to vector<8x1xf32>
    %204 = vector.extract_strided_slice %180 {offsets = [3, 0], sizes = [1, 128], strides = [1, 1]} : vector<4x128xf32> to vector<1x128xf32>
    %205 = vector.broadcast %203 : vector<8x1xf32> to vector<8x128xf32>
    %206 = vector.broadcast %204 : vector<1x128xf32> to vector<8x128xf32>
    %207 = arith.mulf %205, %206 : vector<8x128xf32>
    %208 = arith.addf %201, %207 : vector<8x128xf32>
    %c1_45 = arith.constant 1 : index
    %c0_46 = arith.constant 0 : index
    %c1_47 = arith.constant 1 : index
    %209 = vector.load %arg9[%c1_45, %c0_46, %c1_47] : memref<2x4x256xf32, #tpu.memory_space<vmem>>, vector<1x4x128xf32>
    %210 = vector.shape_cast %209 : vector<1x4x128xf32> to vector<4x128xf32>
    %211 = vector.extract_strided_slice %1 {offsets = [1, 0, 0], sizes = [1, 8, 1], strides = [1, 1, 1]} : vector<5x8x4xf32> to vector<1x8x1xf32>
    %212 = vector.shape_cast %211 : vector<1x8x1xf32> to vector<8x1xf32>
    %213 = vector.extract_strided_slice %210 {offsets = [0, 0], sizes = [1, 128], strides = [1, 1]} : vector<4x128xf32> to vector<1x128xf32>
    %214 = vector.broadcast %212 : vector<8x1xf32> to vector<8x128xf32>
    %215 = vector.broadcast %213 : vector<1x128xf32> to vector<8x128xf32>
    %216 = arith.mulf %214, %215 : vector<8x128xf32>
    %217 = arith.addf %208, %216 : vector<8x128xf32>
    %218 = vector.extract_strided_slice %1 {offsets = [1, 0, 1], sizes = [1, 8, 1], strides = [1, 1, 1]} : vector<5x8x4xf32> to vector<1x8x1xf32>
    %219 = vector.shape_cast %218 : vector<1x8x1xf32> to vector<8x1xf32>
    %220 = vector.extract_strided_slice %210 {offsets = [1, 0], sizes = [1, 128], strides = [1, 1]} : vector<4x128xf32> to vector<1x128xf32>
    %221 = vector.broadcast %219 : vector<8x1xf32> to vector<8x128xf32>
    %222 = vector.broadcast %220 : vector<1x128xf32> to vector<8x128xf32>
    %223 = arith.mulf %221, %222 : vector<8x128xf32>
    %224 = arith.addf %217, %223 : vector<8x128xf32>
    %225 = vector.extract_strided_slice %1 {offsets = [1, 0, 2], sizes = [1, 8, 1], strides = [1, 1, 1]} : vector<5x8x4xf32> to vector<1x8x1xf32>
    %226 = vector.shape_cast %225 : vector<1x8x1xf32> to vector<8x1xf32>
    %227 = vector.extract_strided_slice %210 {offsets = [2, 0], sizes = [1, 128], strides = [1, 1]} : vector<4x128xf32> to vector<1x128xf32>
    %228 = vector.broadcast %226 : vector<8x1xf32> to vector<8x128xf32>
    %229 = vector.broadcast %227 : vector<1x128xf32> to vector<8x128xf32>
    %230 = arith.mulf %228, %229 : vector<8x128xf32>
    %231 = arith.addf %224, %230 : vector<8x128xf32>
    %232 = vector.extract_strided_slice %1 {offsets = [1, 0, 3], sizes = [1, 8, 1], strides = [1, 1, 1]} : vector<5x8x4xf32> to vector<1x8x1xf32>
    %233 = vector.shape_cast %232 : vector<1x8x1xf32> to vector<8x1xf32>
    %234 = vector.extract_strided_slice %210 {offsets = [3, 0], sizes = [1, 128], strides = [1, 1]} : vector<4x128xf32> to vector<1x128xf32>
    %235 = vector.broadcast %233 : vector<8x1xf32> to vector<8x128xf32>
    %236 = vector.broadcast %234 : vector<1x128xf32> to vector<8x128xf32>
    %237 = arith.mulf %235, %236 : vector<8x128xf32>
    %238 = arith.addf %231, %237 : vector<8x128xf32>
    %c1_48 = arith.constant 1 : index
    %c0_49 = arith.constant 0 : index
    %c2_50 = arith.constant 2 : index
    %239 = vector.load %arg9[%c1_48, %c0_49, %c2_50] : memref<2x4x256xf32, #tpu.memory_space<vmem>>, vector<1x4x128xf32>
    %240 = vector.shape_cast %239 : vector<1x4x128xf32> to vector<4x128xf32>
    %241 = vector.extract_strided_slice %1 {offsets = [2, 0, 0], sizes = [1, 8, 1], strides = [1, 1, 1]} : vector<5x8x4xf32> to vector<1x8x1xf32>
    %242 = vector.shape_cast %241 : vector<1x8x1xf32> to vector<8x1xf32>
    %243 = vector.extract_strided_slice %240 {offsets = [0, 0], sizes = [1, 128], strides = [1, 1]} : vector<4x128xf32> to vector<1x128xf32>
    %244 = vector.broadcast %242 : vector<8x1xf32> to vector<8x128xf32>
    %245 = vector.broadcast %243 : vector<1x128xf32> to vector<8x128xf32>
    %246 = arith.mulf %244, %245 : vector<8x128xf32>
    %247 = arith.addf %238, %246 : vector<8x128xf32>
    %248 = vector.extract_strided_slice %1 {offsets = [2, 0, 1], sizes = [1, 8, 1], strides = [1, 1, 1]} : vector<5x8x4xf32> to vector<1x8x1xf32>
    %249 = vector.shape_cast %248 : vector<1x8x1xf32> to vector<8x1xf32>
    %250 = vector.extract_strided_slice %240 {offsets = [1, 0], sizes = [1, 128], strides = [1, 1]} : vector<4x128xf32> to vector<1x128xf32>
    %251 = vector.broadcast %249 : vector<8x1xf32> to vector<8x128xf32>
    %252 = vector.broadcast %250 : vector<1x128xf32> to vector<8x128xf32>
    %253 = arith.mulf %251, %252 : vector<8x128xf32>
    %254 = arith.addf %247, %253 : vector<8x128xf32>
    %255 = vector.extract_strided_slice %1 {offsets = [2, 0, 2], sizes = [1, 8, 1], strides = [1, 1, 1]} : vector<5x8x4xf32> to vector<1x8x1xf32>
    %256 = vector.shape_cast %255 : vector<1x8x1xf32> to vector<8x1xf32>
    %257 = vector.extract_strided_slice %240 {offsets = [2, 0], sizes = [1, 128], strides = [1, 1]} : vector<4x128xf32> to vector<1x128xf32>
    %258 = vector.broadcast %256 : vector<8x1xf32> to vector<8x128xf32>
    %259 = vector.broadcast %257 : vector<1x128xf32> to vector<8x128xf32>
    %260 = arith.mulf %258, %259 : vector<8x128xf32>
    %261 = arith.addf %254, %260 : vector<8x128xf32>
    %262 = vector.extract_strided_slice %1 {offsets = [2, 0, 3], sizes = [1, 8, 1], strides = [1, 1, 1]} : vector<5x8x4xf32> to vector<1x8x1xf32>
    %263 = vector.shape_cast %262 : vector<1x8x1xf32> to vector<8x1xf32>
    %264 = vector.extract_strided_slice %240 {offsets = [3, 0], sizes = [1, 128], strides = [1, 1]} : vector<4x128xf32> to vector<1x128xf32>
    %265 = vector.broadcast %263 : vector<8x1xf32> to vector<8x128xf32>
    %266 = vector.broadcast %264 : vector<1x128xf32> to vector<8x128xf32>
    %267 = arith.mulf %265, %266 : vector<8x128xf32>
    %268 = arith.addf %261, %267 : vector<8x128xf32>
    %c1_51 = arith.constant 1 : index
    %c0_52 = arith.constant 0 : index
    %c3_53 = arith.constant 3 : index
    %269 = vector.load %arg9[%c1_51, %c0_52, %c3_53] : memref<2x4x256xf32, #tpu.memory_space<vmem>>, vector<1x4x128xf32>
    %270 = vector.shape_cast %269 : vector<1x4x128xf32> to vector<4x128xf32>
    %271 = vector.extract_strided_slice %1 {offsets = [3, 0, 0], sizes = [1, 8, 1], strides = [1, 1, 1]} : vector<5x8x4xf32> to vector<1x8x1xf32>
    %272 = vector.shape_cast %271 : vector<1x8x1xf32> to vector<8x1xf32>
    %273 = vector.extract_strided_slice %270 {offsets = [0, 0], sizes = [1, 128], strides = [1, 1]} : vector<4x128xf32> to vector<1x128xf32>
    %274 = vector.broadcast %272 : vector<8x1xf32> to vector<8x128xf32>
    %275 = vector.broadcast %273 : vector<1x128xf32> to vector<8x128xf32>
    %276 = arith.mulf %274, %275 : vector<8x128xf32>
    %277 = arith.addf %268, %276 : vector<8x128xf32>
    %278 = vector.extract_strided_slice %1 {offsets = [3, 0, 1], sizes = [1, 8, 1], strides = [1, 1, 1]} : vector<5x8x4xf32> to vector<1x8x1xf32>
    %279 = vector.shape_cast %278 : vector<1x8x1xf32> to vector<8x1xf32>
    %280 = vector.extract_strided_slice %270 {offsets = [1, 0], sizes = [1, 128], strides = [1, 1]} : vector<4x128xf32> to vector<1x128xf32>
    %281 = vector.broadcast %279 : vector<8x1xf32> to vector<8x128xf32>
    %282 = vector.broadcast %280 : vector<1x128xf32> to vector<8x128xf32>
    %283 = arith.mulf %281, %282 : vector<8x128xf32>
    %284 = arith.addf %277, %283 : vector<8x128xf32>
    %285 = vector.extract_strided_slice %1 {offsets = [3, 0, 2], sizes = [1, 8, 1], strides = [1, 1, 1]} : vector<5x8x4xf32> to vector<1x8x1xf32>
    %286 = vector.shape_cast %285 : vector<1x8x1xf32> to vector<8x1xf32>
    %287 = vector.extract_strided_slice %270 {offsets = [2, 0], sizes = [1, 128], strides = [1, 1]} : vector<4x128xf32> to vector<1x128xf32>
    %288 = vector.broadcast %286 : vector<8x1xf32> to vector<8x128xf32>
    %289 = vector.broadcast %287 : vector<1x128xf32> to vector<8x128xf32>
    %290 = arith.mulf %288, %289 : vector<8x128xf32>
    %291 = arith.addf %284, %290 : vector<8x128xf32>
    %292 = vector.extract_strided_slice %1 {offsets = [3, 0, 3], sizes = [1, 8, 1], strides = [1, 1, 1]} : vector<5x8x4xf32> to vector<1x8x1xf32>
    %293 = vector.shape_cast %292 : vector<1x8x1xf32> to vector<8x1xf32>
    %294 = vector.extract_strided_slice %270 {offsets = [3, 0], sizes = [1, 128], strides = [1, 1]} : vector<4x128xf32> to vector<1x128xf32>
    %295 = vector.broadcast %293 : vector<8x1xf32> to vector<8x128xf32>
    %296 = vector.broadcast %294 : vector<1x128xf32> to vector<8x128xf32>
    %297 = arith.mulf %295, %296 : vector<8x128xf32>
    %298 = arith.addf %291, %297 : vector<8x128xf32>
    %c1_54 = arith.constant 1 : index
    %c0_55 = arith.constant 0 : index
    %c4_56 = arith.constant 4 : index
    %299 = vector.load %arg9[%c1_54, %c0_55, %c4_56] : memref<2x4x256xf32, #tpu.memory_space<vmem>>, vector<1x4x128xf32>
    %300 = vector.shape_cast %299 : vector<1x4x128xf32> to vector<4x128xf32>
    %301 = vector.extract_strided_slice %1 {offsets = [4, 0, 0], sizes = [1, 8, 1], strides = [1, 1, 1]} : vector<5x8x4xf32> to vector<1x8x1xf32>
    %302 = vector.shape_cast %301 : vector<1x8x1xf32> to vector<8x1xf32>
    %303 = vector.extract_strided_slice %300 {offsets = [0, 0], sizes = [1, 128], strides = [1, 1]} : vector<4x128xf32> to vector<1x128xf32>
    %304 = vector.broadcast %302 : vector<8x1xf32> to vector<8x128xf32>
    %305 = vector.broadcast %303 : vector<1x128xf32> to vector<8x128xf32>
    %306 = arith.mulf %304, %305 : vector<8x128xf32>
    %307 = arith.addf %298, %306 : vector<8x128xf32>
    %308 = vector.extract_strided_slice %1 {offsets = [4, 0, 1], sizes = [1, 8, 1], strides = [1, 1, 1]} : vector<5x8x4xf32> to vector<1x8x1xf32>
    %309 = vector.shape_cast %308 : vector<1x8x1xf32> to vector<8x1xf32>
    %310 = vector.extract_strided_slice %300 {offsets = [1, 0], sizes = [1, 128], strides = [1, 1]} : vector<4x128xf32> to vector<1x128xf32>
    %311 = vector.broadcast %309 : vector<8x1xf32> to vector<8x128xf32>
    %312 = vector.broadcast %310 : vector<1x128xf32> to vector<8x128xf32>
    %313 = arith.mulf %311, %312 : vector<8x128xf32>
    %314 = arith.addf %307, %313 : vector<8x128xf32>
    %315 = vector.extract_strided_slice %1 {offsets = [4, 0, 2], sizes = [1, 8, 1], strides = [1, 1, 1]} : vector<5x8x4xf32> to vector<1x8x1xf32>
    %316 = vector.shape_cast %315 : vector<1x8x1xf32> to vector<8x1xf32>
    %317 = vector.extract_strided_slice %300 {offsets = [2, 0], sizes = [1, 128], strides = [1, 1]} : vector<4x128xf32> to vector<1x128xf32>
    %318 = vector.broadcast %316 : vector<8x1xf32> to vector<8x128xf32>
    %319 = vector.broadcast %317 : vector<1x128xf32> to vector<8x128xf32>
    %320 = arith.mulf %318, %319 : vector<8x128xf32>
    %321 = arith.addf %314, %320 : vector<8x128xf32>
    %322 = vector.extract_strided_slice %1 {offsets = [4, 0, 3], sizes = [1, 8, 1], strides = [1, 1, 1]} : vector<5x8x4xf32> to vector<1x8x1xf32>
    %323 = vector.shape_cast %322 : vector<1x8x1xf32> to vector<8x1xf32>
    %324 = vector.extract_strided_slice %300 {offsets = [3, 0], sizes = [1, 128], strides = [1, 1]} : vector<4x128xf32> to vector<1x128xf32>
    %325 = vector.broadcast %323 : vector<8x1xf32> to vector<8x128xf32>
    %326 = vector.broadcast %324 : vector<1x128xf32> to vector<8x128xf32>
    %327 = arith.mulf %325, %326 : vector<8x128xf32>
    %328 = arith.addf %321, %327 : vector<8x128xf32>
    %329 = vector.broadcast %0 : vector<8x1xf32> to vector<8x128xf32>
    %330 = arith.addf %328, %329 : vector<8x128xf32>
    %c1_57 = arith.constant 1 : index
    %c0_58 = arith.constant 0 : index
    %c0_59 = arith.constant 0 : index
    %331 = vector.load %arg8[%c1_57, %c0_58, %c0_59] : memref<2x8x128xf32, #tpu.memory_space<vmem>>, vector<1x8x128xf32>
    %332 = vector.shape_cast %331 : vector<1x8x128xf32> to vector<8x128xf32>
    %333 = vector.shape_cast %330 : vector<8x128xf32> to vector<1x8x128xf32>
    tpu.vector_store %arg8[%c1_57, %c0_58, %c0_59], %333 {strides = array<i32>} : memref<2x8x128xf32, #tpu.memory_space<vmem>>, vector<1x8x128xf32>,
    return
  }
  func.func @transform_0(%arg0: i32, %arg1: i32) -> (i32, i32, i32) {
    %c0_i32 = arith.constant 0 : i32
    %c0_i32_0 = arith.constant 0 : i32
    %c0_i32_1 = arith.constant 0 : i32
    %c0_i32_2 = arith.constant 0 : i32
    return %c0_i32, %c0_i32_0, %c0_i32_1 : i32, i32, i32
  }
  func.func @transform_1(%arg0: i32, %arg1: i32) -> (i32, i32, i32) {
    %c0_i32 = arith.constant 0 : i32
    %c0_i32_0 = arith.constant 0 : i32
    %c0_i32_1 = arith.constant 0 : i32
    %c0_i32_2 = arith.constant 0 : i32
    return %c0_i32, %c0_i32_0, %c0_i32_1 : i32, i32, i32
  }
  func.func @transform_2(%arg0: i32, %arg1: i32) -> (i32, i32) {
    %c0_i32 = arith.constant 0 : i32
    %c0_i32_0 = arith.constant 0 : i32
    %c0_i32_1 = arith.constant 0 : i32
    return %c0_i32, %c0_i32_0 : i32, i32
  }
  func.func @transform_3(%arg0: i32, %arg1: i32) -> (i32, i32) {
    %c0_i32 = arith.constant 0 : i32
    %c0_i32_0 = arith.constant 0 : i32
    %c0_i32_1 = arith.constant 0 : i32
    return %c0_i32, %c0_i32_0 : i32, i32
  }
  func.func @transform_4(%arg0: i32, %arg1: i32) -> (i32, i32, i32) {
    %c0_i32 = arith.constant 0 : i32
    %c0_i32_0 = arith.constant 0 : i32
    return %arg0, %c0_i32, %arg1 : i32, i32, i32
  }
  func.func @transform_5(%arg0: i32, %arg1: i32) -> (i32, i32, i32) {
    %c1_i32 = arith.constant 1 : i32
    %0 = arith.addi %arg1, %c1_i32 : i32
    %c1_i32_0 = arith.constant 1 : i32
    %1 = arith.muli %0, %c1_i32_0 : i32
    %c0_i32 = arith.constant 0 : i32
    %c0_i32_1 = arith.constant 0 : i32
    return %arg0, %c0_i32, %1 : i32, i32, i32
  }
  func.func @transform_6(%arg0: i32, %arg1: i32) -> (i32, i32, i32) {
    %c0_i32 = arith.constant 0 : i32
    %c0_i32_0 = arith.constant 0 : i32
    return %arg0, %c0_i32, %arg1 : i32, i32, i32
  }
}

</mosaic_0001>

<llo_original>
// kernel: tpu_custom_call.1
$region0: #{tpu_custom_call.1}
  #allocation0 [shape = 'u32[]', space=smem, size = 0x4, offset = 0x4, fixed_abs, tag = 'smem constant byte address 0x4 - core index']
  #allocation1 [shape = 'u32[144,128]{1,0:T(1,128)}', space=vmem, size = 0x12000, scoped, tag = 'internal scratch']
  #allocation2 [shape = 'f32[2,4,256]{2,1,0:T(4,128)}', space=vmem, size = 0x2000, scoped, tag = 'scratch operand']
  %s0 = inlined_call_operand.vmem [shape: f32[5,8,4], index: 0, kind: input, shape index: {}]
  %s1 = inlined_call_operand.vmem [shape: f32[5,8,1], index: 1, kind: input, shape index: {}]
  %s2 = inlined_call_operand.vmem [shape: f32[8,4], index: 2, kind: input, shape index: {}]
  %s3 = inlined_call_operand.vmem [shape: f32[8,1], index: 3, kind: input, shape index: {}]
  %s4 = inlined_call_operand.vmem [shape: f32[4,4,256], index: 4, kind: input, shape index: {}]
  %s5 = inlined_call_operand.vmem [shape: f32[4,4,256], index: 5, kind: input, shape index: {}]
  %s6 = inlined_call_operand.hbm [shape: f32[4,8,128], index: 6, kind: output, shape index: {}]
  %s7 = sld [smem:[#allocation0]]
  $region139: #{tpu_custom_call.1} parent=0
    _
  %s9 = ssub.s32 1, %s7
  %s10 = scalar_select 0, %s9, %s7
  $region1: #{tpu_custom_call.1} parent=0
    #allocation3 [shape = 'u8[8192]{0}', space=vmem, size = 0x2000, scoped, tag = 'input window, operand 4']
    #allocation4 [shape = 'u8[8192]{0}', space=vmem, size = 0x2000, scoped, tag = 'input window, operand 5']
    #allocation5 [shape = 'u8[16384]{0}', space=vmem, size = 0x4000, scoped, tag = 'output window, operand 0']
    #allocation6 [shape = 's32[2]{0}', space=sflag, size = 0x8, scoped, tag = 'scoped memory for tpu_custom_call.1']
    %11 = vsyncpa [#allocation6], 0
    %s12 = scalar_lea.sflag [#allocation6], 1
    %13 = vsyncpa %s12, 0
    loop: start=0, step=1, limit=4
    $region2: #{tpu_custom_call.1} parent=1 // loop_pre_header
      _
    $region3: #{tpu_custom_call.1} parent=1 // loop_header
      %s15 = sphi 0, %s19
      %p16 = scmp.ge.s32.totalorder %s15, 4
      %s22 = sphi 0, %s34
      %s23 = sphi 0, %s30
      %s24 = sphi 0, %s22
      %s25 = sphi 0, %s23
      %s26 = sphi 0, %s24
      %s27 = sphi 0, %s25
      %s35 = sphi 0, %s35
      %s37 = sphi 0, %s35
      %s38 = sphi 0, %s37
      %s52 = sphi 0, %s38
      %s56 = sphi 0, %s56
      %s58 = sphi 0, %s56
      %s59 = sphi 0, %s58
      %s73 = sphi 0, %s59
      %s77 = sphi 0, %s77
      %s79 = sphi 0, %s77
      %s80 = sphi 0, %s79
      %s94 = sphi 0, %s80
      %s98 = sphi 0, %s98
      %s100 = sphi 0, %s98
      %s101 = sphi 0, %s100
      %s115 = sphi 0, %s101
      %s123 = sphi 0, %s125
      %s126 = sphi 0, %s123
      %s127 = sphi 0, %s126
      %s143 = sphi 0, %s127
      %s153 = sphi 0, %s155
      %s156 = sphi 0, %s153
      %s157 = sphi 0, %s156
      %s173 = sphi 0, %s157
      %s181 = sphi 0, %s183
      %s184 = sphi 0, %s181
      %s185 = sphi 0, %s184
      %s201 = sphi 0, %s185
    $region4: #{tpu_custom_call.1} parent=1 // loop_header_branch
      %18 = sbr.rel (%p16) target = $region8
    $region5: #{tpu_custom_call.1} parent=1 // loop_body
      %s20 = ssub.s32 %s15, 1
      %s21 = ssub.s32 %s15, 2
      %s28 = sadd.s32 1, %s23
      %p29 = scmp.ge.s32.totalorder %s28, 1
      %s30 = scalar_select %p29, 0, %s28
      %s31 = sadd.s32 1, %s22
      %s32 = scalar_select %p29, %s31, %s22
      %p33 = scmp.ge.s32.totalorder %s32, 2
      %s34 = scalar_select %p33, 0, %s32
      %s36 = sadd.s32 %s35, 1
      %p39 = scmp.eq.s32.totalorder %s15, 1
      %p40 = scmp.ne.s32.totalorder %s35, %s37
      %p41 = scmp.eq.s32.totalorder %s15, 0
      %p42 = por %p40, %p41
      %p43 = scmp.ne.s32.totalorder %s35, %s37
      %p44 = scmp.eq.s32.totalorder %s20, 1
      %p45 = por %p43, %p44
      %p46 = scmp.ne.s32.totalorder %s37, %s38
      %p47 = scmp.eq.s32.totalorder %s20, 0
      %p48 = por %p46, %p47
      %p49 = scmp.ne.s32.totalorder %s37, %s38
      %p50 = scmp.eq.s32.totalorder %s21, 1
      %p51 = por %p49, %p50
      %p53 = scmp.ne.s32.totalorder %s38, %s52
      %p54 = scmp.eq.s32.totalorder %s21, 0
      %p55 = por %p53, %p54
      %s57 = sadd.s32 %s56, 1
      %p60 = scmp.eq.s32.totalorder %s15, 1
      %p61 = scmp.ne.s32.totalorder %s56, %s58
      %p62 = scmp.eq.s32.totalorder %s15, 0
      %p63 = por %p61, %p62
      %p64 = scmp.ne.s32.totalorder %s56, %s58
      %p65 = scmp.eq.s32.totalorder %s20, 1
      %p66 = por %p64, %p65
      %p67 = scmp.ne.s32.totalorder %s58, %s59
      %p68 = scmp.eq.s32.totalorder %s20, 0
      %p69 = por %p67, %p68
      %p70 = scmp.ne.s32.totalorder %s58, %s59
      %p71 = scmp.eq.s32.totalorder %s21, 1
      %p72 = por %p70, %p71
      %p74 = scmp.ne.s32.totalorder %s59, %s73
      %p75 = scmp.eq.s32.totalorder %s21, 0
      %p76 = por %p74, %p75
      %s78 = sadd.s32 %s77, 1
      %p81 = scmp.eq.s32.totalorder %s15, 1
      %p82 = scmp.ne.s32.totalorder %s77, %s79
      %p83 = scmp.eq.s32.totalorder %s15, 0
      %p84 = por %p82, %p83
      %p85 = scmp.ne.s32.totalorder %s77, %s79
      %p86 = scmp.eq.s32.totalorder %s20, 1
      %p87 = por %p85, %p86
      %p88 = scmp.ne.s32.totalorder %s79, %s80
      %p89 = scmp.eq.s32.totalorder %s20, 0
      %p90 = por %p88, %p89
      %p91 = scmp.ne.s32.totalorder %s79, %s80
      %p92 = scmp.eq.s32.totalorder %s21, 1
      %p93 = por %p91, %p92
      %p95 = scmp.ne.s32.totalorder %s80, %s94
      %p96 = scmp.eq.s32.totalorder %s21, 0
      %p97 = por %p95, %p96
      %s99 = sadd.s32 %s98, 1
      %p102 = scmp.eq.s32.totalorder %s15, 1
      %p103 = scmp.ne.s32.totalorder %s98, %s100
      %p104 = scmp.eq.s32.totalorder %s15, 0
      %p105 = por %p103, %p104
      %p106 = scmp.ne.s32.totalorder %s98, %s100
      %p107 = scmp.eq.s32.totalorder %s20, 1
      %p108 = por %p106, %p107
      %p109 = scmp.ne.s32.totalorder %s100, %s101
      %p110 = scmp.eq.s32.totalorder %s20, 0
      %p111 = por %p109, %p110
      %p112 = scmp.ne.s32.totalorder %s100, %s101
      %p113 = scmp.eq.s32.totalorder %s21, 1
      %p114 = por %p112, %p113
      %p116 = scmp.ne.s32.totalorder %s101, %s115
      %p117 = scmp.eq.s32.totalorder %s21, 0
      %p118 = por %p116, %p117
      %s119 = ssub.s32 %s22, %s34
      %s120 = ssub.s32 %s23, %s30
      %s121 = sor.u32 %s119, %s120
      %p122 = scmp.eq.s32.totalorder %s121, 0
      %s124 = sadd.s32 %s123, 1
      %s125 = scalar_select %p122, %s123, %s124
      %p128 = pneg %p122
      %p129 = scmp.eq.s32.totalorder %s15, 1
      %p130 = por %p128, %p129
      %p131 = scmp.ne.s32.totalorder %s123, %s126
      %p132 = scmp.eq.s32.totalorder %s15, 0
      %p133 = por %p131, %p132
      %p134 = scmp.ne.s32.totalorder %s123, %s126
      %p135 = scmp.eq.s32.totalorder %s20, 1
      %p136 = por %p134, %p135
      %p137 = scmp.ne.s32.totalorder %s126, %s127
      %p138 = scmp.eq.s32.totalorder %s20, 0
      %p139 = por %p137, %p138
      %p140 = scmp.ne.s32.totalorder %s126, %s127
      %p141 = scmp.eq.s32.totalorder %s21, 1
      %p142 = por %p140, %p141
      %p144 = scmp.ne.s32.totalorder %s127, %s143
      %p145 = scmp.eq.s32.totalorder %s21, 0
      %p146 = por %p144, %p145
      %s147 = sadd.s32 %s23, 1
      %s148 = sadd.s32 %s30, 1
      %s149 = ssub.s32 %s22, %s34
      %s150 = ssub.s32 %s147, %s148
      %s151 = sor.u32 %s149, %s150
      %p152 = scmp.eq.s32.totalorder %s151, 0
      %s154 = sadd.s32 %s153, 1
      %s155 = scalar_select %p152, %s153, %s154
      %p158 = pneg %p152
      %p159 = scmp.eq.s32.totalorder %s15, 1
      %p160 = por %p158, %p159
      %p161 = scmp.ne.s32.totalorder %s153, %s156
      %p162 = scmp.eq.s32.totalorder %s15, 0
      %p163 = por %p161, %p162
      %p164 = scmp.ne.s32.totalorder %s153, %s156
      %p165 = scmp.eq.s32.totalorder %s20, 1
      %p166 = por %p164, %p165
      %p167 = scmp.ne.s32.totalorder %s156, %s157
      %p168 = scmp.eq.s32.totalorder %s20, 0
      %p169 = por %p167, %p168
      %p170 = scmp.ne.s32.totalorder %s156, %s157
      %p171 = scmp.eq.s32.totalorder %s21, 1
      %p172 = por %p170, %p171
      %p174 = scmp.ne.s32.totalorder %s157, %s173
      %p175 = scmp.eq.s32.totalorder %s21, 0
      %p176 = por %p174, %p175
      %s177 = ssub.s32 %s22, %s34
      %s178 = ssub.s32 %s23, %s30
      %s179 = sor.u32 %s177, %s178
      %p180 = scmp.eq.s32.totalorder %s179, 0
      %s182 = sadd.s32 %s181, 1
      %s183 = scalar_select %p180, %s181, %s182
      %p186 = pneg %p180
      %p187 = scmp.eq.s32.totalorder %s15, 1
      %p188 = por %p186, %p187
      %p189 = scmp.ne.s32.totalorder %s181, %s184
      %p190 = scmp.eq.s32.totalorder %s15, 0
      %p191 = por %p189, %p190
      %p192 = scmp.ne.s32.totalorder %s181, %s184
      %p193 = scmp.eq.s32.totalorder %s20, 1
      %p194 = por %p192, %p193
      %p195 = scmp.ne.s32.totalorder %s184, %s185
      %p196 = scmp.eq.s32.totalorder %s20, 0
      %p197 = por %p195, %p196
      %p198 = scmp.ne.s32.totalorder %s184, %s185
      %p199 = scmp.eq.s32.totalorder %s21, 1
      %p200 = por %p198, %p199
      %p202 = scmp.ne.s32.totalorder %s185, %s201
      %p203 = scmp.eq.s32.totalorder %s21, 0
      %p204 = por %p202, %p203
      %p205 = scmp.le.s32.totalorder 1, %s15
      %p206 = scmp.lt.s32.totalorder %s15, 3
      %p207 = pnand %p205, %p206
      %p208 = pneg %p207
      // Predicated region
      $region9: #{tpu_custom_call.1} parent=5 // pred_check
        _
      $region10: #{tpu_custom_call.1} parent=5 // pred_check_branch
        %210 = sbr.rel (%p207) target = $region12
      $region11: #{tpu_custom_call.1} parent=5 // pred_region
        %s211 = ssub.s32 %s15, 1
        // Predicated region
        $region13: #{tpu_custom_call.1} parent=11 // pred_check
          %p212 = pneg %p48
        $region14: #{tpu_custom_call.1} parent=11 // pred_check_branch
          %214 = sbr.rel (%p212) target = $region16
        $region15: #{tpu_custom_call.1} parent=11 // pred_region
          _
        $region16: #{tpu_custom_call.1} parent=11 // pred_fallthru
          _
        // Predicated region
        $region17: #{tpu_custom_call.1} parent=11 // pred_check
          %p215 = pneg %p69
        $region18: #{tpu_custom_call.1} parent=11 // pred_check_branch
          %217 = sbr.rel (%p215) target = $region20
        $region19: #{tpu_custom_call.1} parent=11 // pred_region
          _
        $region20: #{tpu_custom_call.1} parent=11 // pred_fallthru
          _
        // Predicated region
        $region21: #{tpu_custom_call.1} parent=11 // pred_check
          %p218 = pneg %p90
        $region22: #{tpu_custom_call.1} parent=11 // pred_check_branch
          %220 = sbr.rel (%p218) target = $region24
        $region23: #{tpu_custom_call.1} parent=11 // pred_region
          _
        $region24: #{tpu_custom_call.1} parent=11 // pred_fallthru
          _
        // Predicated region
        $region25: #{tpu_custom_call.1} parent=11 // pred_check
          %p221 = pneg %p111
        $region26: #{tpu_custom_call.1} parent=11 // pred_check_branch
          %223 = sbr.rel (%p221) target = $region28
        $region27: #{tpu_custom_call.1} parent=11 // pred_region
          _
        $region28: #{tpu_custom_call.1} parent=11 // pred_fallthru
          _
      $region12: #{tpu_custom_call.1} parent=5 // pred_fallthru
        _
      %p224 = scmp.lt.s32.totalorder %s15, 2
      // Predicated region
      $region29: #{tpu_custom_call.1} parent=5 // pred_check
        %p225 = pneg %p224
      $region30: #{tpu_custom_call.1} parent=5 // pred_check_branch
        %227 = sbr.rel (%p225) target = $region32
      $region31: #{tpu_custom_call.1} parent=5 // pred_region
        // Predicated region
        $region33: #{tpu_custom_call.1} parent=31 // pred_check
          %p228 = pneg %p133
        $region34: #{tpu_custom_call.1} parent=31 // pred_check_branch
          %230 = sbr.rel (%p228) target = $region36
        $region35: #{tpu_custom_call.1} parent=31 // pred_region
          %s231 = sand.u32 %s123, 1
          %s232 = sand.u32 %s123, 1
          %s233 = smul.addr %s232, 8
          %s234 = scalar_lea.vmem [#allocation3], %s233
          %s235 = smul.u32 2, %s22
          %s236 = smul.addr %s235, 2
          %s237 = sadd.s32 %s23, %s236
          %s238 = smul.addr %s237, 4
          %s239 = scalar_lea.vmem %s4, %s238
          // Predicated region
          $region37: #{tpu_custom_call.1} parent=35 // pred_check
            _
          $region38: #{tpu_custom_call.1} parent=35 // pred_check_branch
            %241 = sbr.rel (0) target = $region40
          $region39: #{tpu_custom_call.1} parent=35 // pred_region
            // Predicated region
            $region41: #{tpu_custom_call.1} parent=39 // pred_check
              _
            $region42: #{tpu_custom_call.1} parent=39 // pred_check_branch
              %243 = sbr.rel target = $region44
            $region43: #{tpu_custom_call.1} parent=39 // pred_region
              // Predicated region
              $region56: #{tpu_custom_call.1} parent=43 // pred_check
                _
              $region57: #{tpu_custom_call.1} parent=43 // pred_check_branch
                %260 = sbr.rel (0) target = $region59
              $region58: #{tpu_custom_call.1} parent=43 // pred_region
                loop: start=0, step=1, limit=1
                $region60: #{tpu_custom_call.1} parent=58 // loop_pre_header
                  _
                $region61: #{tpu_custom_call.1} parent=58 // loop_header
                  %s262 = sphi 0, %s266
                  %p263 = scmp.ge.s32.totalorder %s262, 1
                  %s267 = sphi %s239, %s239
                  %s268 = sphi %s234, %s234
                $region62: #{tpu_custom_call.1} parent=58 // loop_header_branch
                  %265 = sbr.rel (%p263) target = $region66
                $region63: #{tpu_custom_call.1} parent=58 // loop_body
                  _
                $region64: #{tpu_custom_call.1} parent=58 // loop_footer
                  %s266 = sadd.s32 1, %s262
                $region65: #{tpu_custom_call.1} parent=58 // loop_footer_branch
                  %261 = sbr.rel target = $region61
                $region66: #{tpu_custom_call.1} parent=58 // loop_exit
                  _
                loop: start=0, step=1, limit=1
                $region67: #{tpu_custom_call.1} parent=58 // loop_pre_header
                  _
                $region68: #{tpu_custom_call.1} parent=58 // loop_header
                  %s271 = sphi 0, %s275
                  %p272 = scmp.ge.s32.totalorder %s271, 1
                  %s276 = sphi %s239, %s239
                  %s277 = sphi %s234, %s234
                $region69: #{tpu_custom_call.1} parent=58 // loop_header_branch
                  %274 = sbr.rel (%p272) target = $region73
                $region70: #{tpu_custom_call.1} parent=58 // loop_body
                  %v278 = vld [vmem:[%s276] sm:$0xf]
                  %279 = vst [vmem:[%s277] sm:$0xf] %v278
                  %v280 = vld [vmem:[%s276 + $0x8] sm:$0xf]
                  %281 = vst [vmem:[%s277 + $0x4] sm:$0xf] %v280
                $region71: #{tpu_custom_call.1} parent=58 // loop_footer
                  %s275 = sadd.s32 1, %s271
                $region72: #{tpu_custom_call.1} parent=58 // loop_footer_branch
                  %270 = sbr.rel target = $region68
                $region73: #{tpu_custom_call.1} parent=58 // loop_exit
                  _
              $region59: #{tpu_custom_call.1} parent=43 // pred_fallthru
                _
            $region44: #{tpu_custom_call.1} parent=39 // pred_fallthru
              _
            // Predicated region
            $region45: #{tpu_custom_call.1} parent=39 // pred_check
              _
            $region46: #{tpu_custom_call.1} parent=39 // pred_check_branch
              %245 = sbr.rel (0) target = $region48
            $region47: #{tpu_custom_call.1} parent=39 // pred_region
              loop: start=0, step=1, limit=1
              $region49: #{tpu_custom_call.1} parent=47 // loop_pre_header
                _
              $region50: #{tpu_custom_call.1} parent=47 // loop_header
                %s248 = sphi 0, %s252
                %p249 = scmp.ge.s32.totalorder %s248, 1
                %s253 = sphi %s239, %s239
                %s254 = sphi %s234, %s234
              $region51: #{tpu_custom_call.1} parent=47 // loop_header_branch
                %251 = sbr.rel (%p249) target = $region55
              $region52: #{tpu_custom_call.1} parent=47 // loop_body
                %v255 = vld [vmem:[%s253] sm:$0xf]
                %256 = vst [vmem:[%s254] sm:$0xf] %v255
                %v257 = vld [vmem:[%s253 + $0x8] sm:$0xf]
                %258 = vst [vmem:[%s254 + $0x4] sm:$0xf] %v257
              $region53: #{tpu_custom_call.1} parent=47 // loop_footer
                %s252 = sadd.s32 1, %s248
              $region54: #{tpu_custom_call.1} parent=47 // loop_footer_branch
                %247 = sbr.rel target = $region50
              $region55: #{tpu_custom_call.1} parent=47 // loop_exit
                _
            $region48: #{tpu_custom_call.1} parent=39 // pred_fallthru
              _
          $region40: #{tpu_custom_call.1} parent=35 // pred_fallthru
            _
          %282 = vnop
        $region36: #{tpu_custom_call.1} parent=31 // pred_fallthru
          _
        // Predicated region
        $region74: #{tpu_custom_call.1} parent=31 // pred_check
          %p283 = pneg %p163
        $region75: #{tpu_custom_call.1} parent=31 // pred_check_branch
          %285 = sbr.rel (%p283) target = $region77
        $region76: #{tpu_custom_call.1} parent=31 // pred_region
          %s286 = sand.u32 %s153, 1
          %s287 = sand.u32 %s153, 1
          %s288 = smul.addr %s287, 8
          %s289 = scalar_lea.vmem [#allocation4], %s288
          %s290 = sadd.s32 %s23, 1
          %s291 = smul.u32 2, %s22
          %s292 = smul.addr %s291, 2
          %s293 = sadd.s32 %s290, %s292
          %s294 = smul.addr %s293, 4
          %s295 = scalar_lea.vmem %s5, %s294
          // Predicated region
          $region78: #{tpu_custom_call.1} parent=76 // pred_check
            _
          $region79: #{tpu_custom_call.1} parent=76 // pred_check_branch
            %297 = sbr.rel (0) target = $region81
          $region80: #{tpu_custom_call.1} parent=76 // pred_region
            // Predicated region
            $region82: #{tpu_custom_call.1} parent=80 // pred_check
              _
            $region83: #{tpu_custom_call.1} parent=80 // pred_check_branch
              %299 = sbr.rel target = $region85
            $region84: #{tpu_custom_call.1} parent=80 // pred_region
              // Predicated region
              $region97: #{tpu_custom_call.1} parent=84 // pred_check
                _
              $region98: #{tpu_custom_call.1} parent=84 // pred_check_branch
                %316 = sbr.rel (0) target = $region100
              $region99: #{tpu_custom_call.1} parent=84 // pred_region
                loop: start=0, step=1, limit=1
                $region101: #{tpu_custom_call.1} parent=99 // loop_pre_header
                  _
                $region102: #{tpu_custom_call.1} parent=99 // loop_header
                  %s318 = sphi 0, %s322
                  %p319 = scmp.ge.s32.totalorder %s318, 1
                  %s323 = sphi %s295, %s295
                  %s324 = sphi %s289, %s289
                $region103: #{tpu_custom_call.1} parent=99 // loop_header_branch
                  %321 = sbr.rel (%p319) target = $region107
                $region104: #{tpu_custom_call.1} parent=99 // loop_body
                  _
                $region105: #{tpu_custom_call.1} parent=99 // loop_footer
                  %s322 = sadd.s32 1, %s318
                $region106: #{tpu_custom_call.1} parent=99 // loop_footer_branch
                  %317 = sbr.rel target = $region102
                $region107: #{tpu_custom_call.1} parent=99 // loop_exit
                  _
                loop: start=0, step=1, limit=1
                $region108: #{tpu_custom_call.1} parent=99 // loop_pre_header
                  _
                $region109: #{tpu_custom_call.1} parent=99 // loop_header
                  %s327 = sphi 0, %s331
                  %p328 = scmp.ge.s32.totalorder %s327, 1
                  %s332 = sphi %s295, %s295
                  %s333 = sphi %s289, %s289
                $region110: #{tpu_custom_call.1} parent=99 // loop_header_branch
                  %330 = sbr.rel (%p328) target = $region114
                $region111: #{tpu_custom_call.1} parent=99 // loop_body
                  %v334 = vld [vmem:[%s332] sm:$0xf]
                  %335 = vst [vmem:[%s333] sm:$0xf] %v334
                  %v336 = vld [vmem:[%s332 + $0x8] sm:$0xf]
                  %337 = vst [vmem:[%s333 + $0x4] sm:$0xf] %v336
                $region112: #{tpu_custom_call.1} parent=99 // loop_footer
                  %s331 = sadd.s32 1, %s327
                $region113: #{tpu_custom_call.1} parent=99 // loop_footer_branch
                  %326 = sbr.rel target = $region109
                $region114: #{tpu_custom_call.1} parent=99 // loop_exit
                  _
              $region100: #{tpu_custom_call.1} parent=84 // pred_fallthru
                _
            $region85: #{tpu_custom_call.1} parent=80 // pred_fallthru
              _
            // Predicated region
            $region86: #{tpu_custom_call.1} parent=80 // pred_check
              _
            $region87: #{tpu_custom_call.1} parent=80 // pred_check_branch
              %301 = sbr.rel (0) target = $region89
            $region88: #{tpu_custom_call.1} parent=80 // pred_region
              loop: start=0, step=1, limit=1
              $region90: #{tpu_custom_call.1} parent=88 // loop_pre_header
                _
              $region91: #{tpu_custom_call.1} parent=88 // loop_header
                %s304 = sphi 0, %s308
                %p305 = scmp.ge.s32.totalorder %s304, 1
                %s309 = sphi %s295, %s295
                %s310 = sphi %s289, %s289
              $region92: #{tpu_custom_call.1} parent=88 // loop_header_branch
                %307 = sbr.rel (%p305) target = $region96
              $region93: #{tpu_custom_call.1} parent=88 // loop_body
                %v311 = vld [vmem:[%s309] sm:$0xf]
                %312 = vst [vmem:[%s310] sm:$0xf] %v311
                %v313 = vld [vmem:[%s309 + $0x8] sm:$0xf]
                %314 = vst [vmem:[%s310 + $0x4] sm:$0xf] %v313
              $region94: #{tpu_custom_call.1} parent=88 // loop_footer
                %s308 = sadd.s32 1, %s304
              $region95: #{tpu_custom_call.1} parent=88 // loop_footer_branch
                %303 = sbr.rel target = $region91
              $region96: #{tpu_custom_call.1} parent=88 // loop_exit
                _
            $region89: #{tpu_custom_call.1} parent=80 // pred_fallthru
              _
          $region81: #{tpu_custom_call.1} parent=76 // pred_fallthru
            _
          %338 = vnop
        $region77: #{tpu_custom_call.1} parent=31 // pred_fallthru
          _
      $region32: #{tpu_custom_call.1} parent=5 // pred_fallthru
        _
      %p339 = scmp.le.s32.totalorder 1, %s15
      %p340 = scmp.lt.s32.totalorder %s15, 3
      %p341 = pnand %p339, %p340
      %p342 = pneg %p341
      // Predicated region
      $region115: #{tpu_custom_call.1} parent=5 // pred_check
        _
      $region116: #{tpu_custom_call.1} parent=5 // pred_check_branch
        %344 = sbr.rel (%p341) target = $region118
      $region117: #{tpu_custom_call.1} parent=5 // pred_region
        %s345 = ssub.s32 %s15, 1
        %s346 = sand.u32 %s126, 1
        %s347 = sand.u32 %s126, 1
        %s348 = smul.addr %s347, 8
        %s349 = scalar_lea.vmem [#allocation3], %s348
        // Predicated region
        $region119: #{tpu_custom_call.1} parent=117 // pred_check
          %p350 = pneg %p139
        $region120: #{tpu_custom_call.1} parent=117 // pred_check_branch
          %352 = sbr.rel (%p350) target = $region122
        $region121: #{tpu_custom_call.1} parent=117 // pred_region
          _
        $region122: #{tpu_custom_call.1} parent=117 // pred_fallthru
          _
        %s353 = sand.u32 %s156, 1
        %s354 = sand.u32 %s156, 1
        %s355 = smul.addr %s354, 8
        %s356 = scalar_lea.vmem [#allocation4], %s355
        // Predicated region
        $region123: #{tpu_custom_call.1} parent=117 // pred_check
          %p357 = pneg %p169
        $region124: #{tpu_custom_call.1} parent=117 // pred_check_branch
          %359 = sbr.rel (%p357) target = $region126
        $region125: #{tpu_custom_call.1} parent=117 // pred_region
          _
        $region126: #{tpu_custom_call.1} parent=117 // pred_fallthru
          _
        %p360 = pneg %p48
        %p361 = pneg %p45
        %p362 = pneg %p69
        %p363 = pneg %p66
        %p364 = pneg %p90
        %p365 = pneg %p87
        %p366 = pneg %p111
        %p367 = pneg %p108
        %s368 = sand.u32 %s126, 1
        %s369 = sand.u32 %s126, 1
        %s370 = smul.addr %s369, 8
        %s371 = scalar_lea.vmem [#allocation3], %s370
        %p372 = pneg %p139
        %p373 = pneg %p136
        %s374 = sand.u32 %s156, 1
        %s375 = sand.u32 %s156, 1
        %s376 = smul.addr %s375, 8
        %s377 = scalar_lea.vmem [#allocation4], %s376
        %p378 = pneg %p169
        %p379 = pneg %p166
        %p380 = pneg %p197
        %p381 = pneg %p194
        %s382 = sand.u32 %s184, 1
        %s383 = scalar_lea.sflag [#allocation6], %s382
        %s384 = sand.u32 %s184, 1
        %s385 = smul.addr %s384, 16
        %s386 = scalar_lea.vmem [#allocation5], %s385
        %s387 = smul.u32 2, %s24
        %s388 = sadd.s32 %s25, 1
        %s389 = smul.u32 2, %s24
        %s390 = smul.u32 2, %s24
        %v391 = vld [vmem:[%s3] sm:$0xff]
        %v392 = vld [vmem:[%s0] sm:$0xff]
        %v393 = vld [vmem:[%s0 + $0x8] sm:$0xff]
        %v394 = vld [vmem:[%s0 + $0x10] sm:$0xff]
        %v395 = vld [vmem:[%s0 + $0x18] sm:$0xff]
        %v396 = vld [vmem:[%s0 + $0x20] sm:$0xff]
        %v397 = vld [vmem:[%s349] sm:$0xf]
        %398 = vst [vmem:[#allocation2] sm:$0xf] %v397
        %v399 = vld [vmem:[%s356] sm:$0xf]
        %400 = vst [vmem:[#allocation2 + $0x4] sm:$0xf] %v399
        %v401 = vld [vmem:[#allocation2] sm:$0xf]
        %403 = vset.pattern.permute.xlu0 0
        %404 = vperm.xlu0 %403, %v392
        %v405 = vpop.permute.xlu0 %404
        %v407 = vlaneseq
        %v408 = vshrl.u32 %v407, 7
        %v409 = vsub.s32 0, %v408
        %v410 = vrot.slane %v401, %v409
        %v411 = vmul.f32 %v405, %v410
        %v412 = vadd.f32 %v411, 0.0
        %413 = vset.pattern.permute.xlu0 1
        %414 = vperm.xlu0 %413, %v392
        %v415 = vpop.permute.xlu0 %414
        %v417 = vlaneseq
        %v418 = vshrl.u32 %v417, 7
        %v419 = vsub.s32 1, %v418
        %v420 = vrot.slane %v401, %v419
        %v421 = vmul.f32 %v415, %v420
        %v422 = vadd.f32 %v412, %v421
        %423 = vset.pattern.permute.xlu0 2
        %424 = vperm.xlu0 %423, %v392
        %v425 = vpop.permute.xlu0 %424
        %v427 = vlaneseq
        %v428 = vshrl.u32 %v427, 7
        %v429 = vsub.s32 2, %v428
        %v430 = vrot.slane %v401, %v429
        %v431 = vmul.f32 %v425, %v430
        %v432 = vadd.f32 %v422, %v431
        %433 = vset.pattern.permute.xlu0 3
        %434 = vperm.xlu0 %433, %v392
        %v435 = vpop.permute.xlu0 %434
        %v437 = vlaneseq
        %v438 = vshrl.u32 %v437, 7
        %v439 = vsub.s32 3, %v438
        %v440 = vrot.slane %v401, %v439
        %v441 = vmul.f32 %v435, %v440
        %v442 = vadd.f32 %v432, %v441
        %v443 = vld [vmem:[#allocation2] sm:$0xff]
        %445 = vset.pattern.permute.xlu0 0
        %446 = vperm.xlu0 %445, %v393
        %v447 = vpop.permute.xlu0 %446
        %v450 = vlaneseq
        %v451 = vshrl.u32 %v450, 7
        %v452 = vsub.s32 0, %v451
        %v453 = vrot.slane %v443, %v452
        %v454 = vlaneseq
        %v455 = vshrl.u32 %v454, 7
        %v456 = vsub.s32 4, %v455
        %v457 = vrot.slane %v443, %v456
        %v460 = vlaneseq
        %v461 = vshrl.u32 %v460, 7
        %v462 = vsub.s32 0, %v461
        %v463 = vrot.slane %v453, %v462
        %v464 = vlaneseq
        %v465 = vshrl.u32 %v464, 7
        %v466 = vsub.s32 0, %v465
        %v467 = vrot.slane %v457, %v466
        %v468 = vmul.f32 %v447, %v463
        %v469 = vmul.f32 %v447, %v467
        %472 = vrot.lane.b32.xlu0 %v468, 127
        %v473 = vpop.permute.xlu0 %472
        %474 = vrot.lane.b32.xlu0 %v469, 127
        %v475 = vpop.permute.xlu0 %474
        %vm476 = vcmask 1039360
        %v477 = vsel %vm476, %v473, %v475
        %v479 = vadd.f32 %v442, %v477
        %480 = vset.pattern.permute.xlu0 1
        %481 = vperm.xlu0 %480, %v393
        %v482 = vpop.permute.xlu0 %481
        %v484 = vlaneseq
        %v485 = vshrl.u32 %v484, 7
        %v486 = vsub.s32 1, %v485
        %v487 = vrot.slane %v443, %v486
        %v488 = vlaneseq
        %v489 = vshrl.u32 %v488, 7
        %v490 = vsub.s32 5, %v489
        %v491 = vrot.slane %v443, %v490
        %v494 = vlaneseq
        %v495 = vshrl.u32 %v494, 7
        %v496 = vsub.s32 1, %v495
        %v497 = vrot.slane %v487, %v496
        %v498 = vlaneseq
        %v499 = vshrl.u32 %v498, 7
        %v500 = vsub.s32 1, %v499
        %v501 = vrot.slane %v491, %v500
        %v502 = vmul.f32 %v482, %v497
        %v503 = vmul.f32 %v482, %v501
        %506 = vrot.lane.b32.xlu0 %v502, 127
        %v507 = vpop.permute.xlu0 %506
        %508 = vrot.lane.b32.xlu0 %v503, 127
        %v509 = vpop.permute.xlu0 %508
        %v510 = vsel %vm476, %v507, %v509
        %v512 = vadd.f32 %v479, %v510
        %513 = vset.pattern.permute.xlu0 2
        %514 = vperm.xlu0 %513, %v393
        %v515 = vpop.permute.xlu0 %514
        %v517 = vlaneseq
        %v518 = vshrl.u32 %v517, 7
        %v519 = vsub.s32 2, %v518
        %v520 = vrot.slane %v443, %v519
        %v521 = vlaneseq
        %v522 = vshrl.u32 %v521, 7
        %v523 = vsub.s32 6, %v522
        %v524 = vrot.slane %v443, %v523
        %v527 = vlaneseq
        %v528 = vshrl.u32 %v527, 7
        %v529 = vsub.s32 2, %v528
        %v530 = vrot.slane %v520, %v529
        %v531 = vlaneseq
        %v532 = vshrl.u32 %v531, 7
        %v533 = vsub.s32 2, %v532
        %v534 = vrot.slane %v524, %v533
        %v535 = vmul.f32 %v515, %v530
        %v536 = vmul.f32 %v515, %v534
        %539 = vrot.lane.b32.xlu0 %v535, 127
        %v540 = vpop.permute.xlu0 %539
        %541 = vrot.lane.b32.xlu0 %v536, 127
        %v542 = vpop.permute.xlu0 %541
        %v543 = vsel %vm476, %v540, %v542
        %v545 = vadd.f32 %v512, %v543
        %546 = vset.pattern.permute.xlu0 3
        %547 = vperm.xlu0 %546, %v393
        %v548 = vpop.permute.xlu0 %547
        %v550 = vlaneseq
        %v551 = vshrl.u32 %v550, 7
        %v552 = vsub.s32 3, %v551
        %v553 = vrot.slane %v443, %v552
        %v554 = vlaneseq
        %v555 = vshrl.u32 %v554, 7
        %v556 = vsub.s32 7, %v555
        %v557 = vrot.slane %v443, %v556
        %v560 = vlaneseq
        %v561 = vshrl.u32 %v560, 7
        %v562 = vsub.s32 3, %v561
        %v563 = vrot.slane %v553, %v562
        %v564 = vlaneseq
        %v565 = vshrl.u32 %v564, 7
        %v566 = vsub.s32 3, %v565
        %v567 = vrot.slane %v557, %v566
        %v568 = vmul.f32 %v548, %v563
        %v569 = vmul.f32 %v548, %v567
        %572 = vrot.lane.b32.xlu0 %v568, 127
        %v573 = vpop.permute.xlu0 %572
        %574 = vrot.lane.b32.xlu0 %v569, 127
        %v575 = vpop.permute.xlu0 %574
        %v576 = vsel %vm476, %v573, %v575
        %v578 = vadd.f32 %v545, %v576
        %580 = vset.pattern.permute.xlu0 0
        %581 = vperm.xlu0 %580, %v394
        %v582 = vpop.permute.xlu0 %581
        %v584 = vmul.f32 %v582, %v463
        %v585 = vmul.f32 %v582, %v467
        %588 = vrot.lane.b32.xlu0 %v584, 126
        %v589 = vpop.permute.xlu0 %588
        %590 = vrot.lane.b32.xlu0 %v585, 126
        %v591 = vpop.permute.xlu0 %590
        %vm592 = vcmask 1031168
        %v593 = vsel %vm592, %v589, %v591
        %v595 = vadd.f32 %v578, %v593
        %596 = vset.pattern.permute.xlu0 1
        %597 = vperm.xlu0 %596, %v394
        %v598 = vpop.permute.xlu0 %597
        %v600 = vmul.f32 %v598, %v497
        %v601 = vmul.f32 %v598, %v501
        %604 = vrot.lane.b32.xlu0 %v600, 126
        %v605 = vpop.permute.xlu0 %604
        %606 = vrot.lane.b32.xlu0 %v601, 126
        %v607 = vpop.permute.xlu0 %606
        %v608 = vsel %vm592, %v605, %v607
        %v610 = vadd.f32 %v595, %v608
        %611 = vset.pattern.permute.xlu0 2
        %612 = vperm.xlu0 %611, %v394
        %v613 = vpop.permute.xlu0 %612
        %v615 = vmul.f32 %v613, %v530
        %v616 = vmul.f32 %v613, %v534
        %619 = vrot.lane.b32.xlu0 %v615, 126
        %v620 = vpop.permute.xlu0 %619
        %621 = vrot.lane.b32.xlu0 %v616, 126
        %v622 = vpop.permute.xlu0 %621
        %v623 = vsel %vm592, %v620, %v622
        %v625 = vadd.f32 %v610, %v623
        %626 = vset.pattern.permute.xlu0 3
        %627 = vperm.xlu0 %626, %v394
        %v628 = vpop.permute.xlu0 %627
        %v630 = vmul.f32 %v628, %v563
        %v631 = vmul.f32 %v628, %v567
        %634 = vrot.lane.b32.xlu0 %v630, 126
        %v635 = vpop.permute.xlu0 %634
        %636 = vrot.lane.b32.xlu0 %v631, 126
        %v637 = vpop.permute.xlu0 %636
        %v638 = vsel %vm592, %v635, %v637
        %v640 = vadd.f32 %v625, %v638
        %642 = vset.pattern.permute.xlu0 0
        %643 = vperm.xlu0 %642, %v395
        %v644 = vpop.permute.xlu0 %643
        %v646 = vmul.f32 %v644, %v463
        %v647 = vmul.f32 %v644, %v467
        %650 = vrot.lane.b32.xlu0 %v646, 125
        %v651 = vpop.permute.xlu0 %650
        %652 = vrot.lane.b32.xlu0 %v647, 125
        %v653 = vpop.permute.xlu0 %652
        %vm654 = vcmask 1022976
        %v655 = vsel %vm654, %v651, %v653
        %v657 = vadd.f32 %v640, %v655
        %658 = vset.pattern.permute.xlu0 1
        %659 = vperm.xlu0 %658, %v395
        %v660 = vpop.permute.xlu0 %659
        %v662 = vmul.f32 %v660, %v497
        %v663 = vmul.f32 %v660, %v501
        %666 = vrot.lane.b32.xlu0 %v662, 125
        %v667 = vpop.permute.xlu0 %666
        %668 = vrot.lane.b32.xlu0 %v663, 125
        %v669 = vpop.permute.xlu0 %668
        %v670 = vsel %vm654, %v667, %v669
        %v672 = vadd.f32 %v657, %v670
        %673 = vset.pattern.permute.xlu0 2
        %674 = vperm.xlu0 %673, %v395
        %v675 = vpop.permute.xlu0 %674
        %v677 = vmul.f32 %v675, %v530
        %v678 = vmul.f32 %v675, %v534
        %681 = vrot.lane.b32.xlu0 %v677, 125
        %v682 = vpop.permute.xlu0 %681
        %683 = vrot.lane.b32.xlu0 %v678, 125
        %v684 = vpop.permute.xlu0 %683
        %v685 = vsel %vm654, %v682, %v684
        %v687 = vadd.f32 %v672, %v685
        %688 = vset.pattern.permute.xlu0 3
        %689 = vperm.xlu0 %688, %v395
        %v690 = vpop.permute.xlu0 %689
        %v692 = vmul.f32 %v690, %v563
        %v693 = vmul.f32 %v690, %v567
        %696 = vrot.lane.b32.xlu0 %v692, 125
        %v697 = vpop.permute.xlu0 %696
        %698 = vrot.lane.b32.xlu0 %v693, 125
        %v699 = vpop.permute.xlu0 %698
        %v700 = vsel %vm654, %v697, %v699
        %v702 = vadd.f32 %v687, %v700
        %704 = vset.pattern.permute.xlu0 0
        %705 = vperm.xlu0 %704, %v396
        %v706 = vpop.permute.xlu0 %705
        %v708 = vmul.f32 %v706, %v463
        %v709 = vmul.f32 %v706, %v467
        %712 = vrot.lane.b32.xlu0 %v708, 124
        %v713 = vpop.permute.xlu0 %712
        %714 = vrot.lane.b32.xlu0 %v709, 124
        %v715 = vpop.permute.xlu0 %714
        %vm716 = vcmask 1014784
        %v717 = vsel %vm716, %v713, %v715
        %v719 = vadd.f32 %v702, %v717
        %720 = vset.pattern.permute.xlu0 1
        %721 = vperm.xlu0 %720, %v396
        %v722 = vpop.permute.xlu0 %721
        %v724 = vmul.f32 %v722, %v497
        %v725 = vmul.f32 %v722, %v501
        %728 = vrot.lane.b32.xlu0 %v724, 124
        %v729 = vpop.permute.xlu0 %728
        %730 = vrot.lane.b32.xlu0 %v725, 124
        %v731 = vpop.permute.xlu0 %730
        %v732 = vsel %vm716, %v729, %v731
        %v734 = vadd.f32 %v719, %v732
        %735 = vset.pattern.permute.xlu0 2
        %736 = vperm.xlu0 %735, %v396
        %v737 = vpop.permute.xlu0 %736
        %v739 = vmul.f32 %v737, %v530
        %v740 = vmul.f32 %v737, %v534
        %743 = vrot.lane.b32.xlu0 %v739, 124
        %v744 = vpop.permute.xlu0 %743
        %745 = vrot.lane.b32.xlu0 %v740, 124
        %v746 = vpop.permute.xlu0 %745
        %v747 = vsel %vm716, %v744, %v746
        %v749 = vadd.f32 %v734, %v747
        %750 = vset.pattern.permute.xlu0 3
        %751 = vperm.xlu0 %750, %v396
        %v752 = vpop.permute.xlu0 %751
        %v754 = vmul.f32 %v752, %v563
        %v755 = vmul.f32 %v752, %v567
        %758 = vrot.lane.b32.xlu0 %v754, 124
        %v759 = vpop.permute.xlu0 %758
        %760 = vrot.lane.b32.xlu0 %v755, 124
        %v761 = vpop.permute.xlu0 %760
        %v762 = vsel %vm716, %v759, %v761
        %v764 = vadd.f32 %v749, %v762
        %766 = vset.pattern.permute.xlu0 0
        %767 = vperm.xlu0 %766, %v391
        %v768 = vpop.permute.xlu0 %767
        %v770 = vadd.f32 %v764, %v768
        %771 = vst [vmem:[%s386] sm:$0xff] %v770
        %s772 = scalar_lea.vmem %s349, 4 [#allocation3]
        %v773 = vld [vmem:[%s772] sm:$0xf]
        %s774 = scalar_lea.vmem [#allocation2], 8
        %775 = vst [vmem:[%s774] sm:$0xf] %v773
        %s776 = scalar_lea.vmem %s356, 4 [#allocation4]
        %v777 = vld [vmem:[%s776] sm:$0xf]
        %778 = vst [vmem:[%s774 + $0x4] sm:$0xf] %v777
        %v779 = vld [vmem:[%s774] sm:$0xf]
        %v780 = vlaneseq
        %v781 = vshrl.u32 %v780, 7
        %v782 = vsub.s32 0, %v781
        %v783 = vrot.slane %v779, %v782
        %v784 = vmul.f32 %v405, %v783
        %v785 = vadd.f32 %v784, 0.0
        %v786 = vlaneseq
        %v787 = vshrl.u32 %v786, 7
        %v788 = vsub.s32 1, %v787
        %v789 = vrot.slane %v779, %v788
        %v790 = vmul.f32 %v415, %v789
        %v791 = vadd.f32 %v785, %v790
        %v792 = vlaneseq
        %v793 = vshrl.u32 %v792, 7
        %v794 = vsub.s32 2, %v793
        %v795 = vrot.slane %v779, %v794
        %v796 = vmul.f32 %v425, %v795
        %v797 = vadd.f32 %v791, %v796
        %v798 = vlaneseq
        %v799 = vshrl.u32 %v798, 7
        %v800 = vsub.s32 3, %v799
        %v801 = vrot.slane %v779, %v800
        %v802 = vmul.f32 %v435, %v801
        %v803 = vadd.f32 %v797, %v802
        %v804 = vld [vmem:[%s774] sm:$0xff]
        %v806 = vlaneseq
        %v807 = vshrl.u32 %v806, 7
        %v808 = vsub.s32 0, %v807
        %v809 = vrot.slane %v804, %v808
        %v810 = vlaneseq
        %v811 = vshrl.u32 %v810, 7
        %v812 = vsub.s32 4, %v811
        %v813 = vrot.slane %v804, %v812
        %v816 = vlaneseq
        %v817 = vshrl.u32 %v816, 7
        %v818 = vsub.s32 0, %v817
        %v819 = vrot.slane %v809, %v818
        %v820 = vlaneseq
        %v821 = vshrl.u32 %v820, 7
        %v822 = vsub.s32 0, %v821
        %v823 = vrot.slane %v813, %v822
        %v824 = vmul.f32 %v447, %v819
        %v825 = vmul.f32 %v447, %v823
        %828 = vrot.lane.b32.xlu0 %v824, 127
        %v829 = vpop.permute.xlu0 %828
        %830 = vrot.lane.b32.xlu0 %v825, 127
        %v831 = vpop.permute.xlu0 %830
        %v832 = vsel %vm476, %v829, %v831
        %v834 = vadd.f32 %v803, %v832
        %v835 = vlaneseq
        %v836 = vshrl.u32 %v835, 7
        %v837 = vsub.s32 1, %v836
        %v838 = vrot.slane %v804, %v837
        %v839 = vlaneseq
        %v840 = vshrl.u32 %v839, 7
        %v841 = vsub.s32 5, %v840
        %v842 = vrot.slane %v804, %v841
        %v845 = vlaneseq
        %v846 = vshrl.u32 %v845, 7
        %v847 = vsub.s32 1, %v846
        %v848 = vrot.slane %v838, %v847
        %v849 = vlaneseq
        %v850 = vshrl.u32 %v849, 7
        %v851 = vsub.s32 1, %v850
        %v852 = vrot.slane %v842, %v851
        %v853 = vmul.f32 %v482, %v848
        %v854 = vmul.f32 %v482, %v852
        %857 = vrot.lane.b32.xlu0 %v853, 127
        %v858 = vpop.permute.xlu0 %857
        %859 = vrot.lane.b32.xlu0 %v854, 127
        %v860 = vpop.permute.xlu0 %859
        %v861 = vsel %vm476, %v858, %v860
        %v863 = vadd.f32 %v834, %v861
        %v864 = vlaneseq
        %v865 = vshrl.u32 %v864, 7
        %v866 = vsub.s32 2, %v865
        %v867 = vrot.slane %v804, %v866
        %v868 = vlaneseq
        %v869 = vshrl.u32 %v868, 7
        %v870 = vsub.s32 6, %v869
        %v871 = vrot.slane %v804, %v870
        %v874 = vlaneseq
        %v875 = vshrl.u32 %v874, 7
        %v876 = vsub.s32 2, %v875
        %v877 = vrot.slane %v867, %v876
        %v878 = vlaneseq
        %v879 = vshrl.u32 %v878, 7
        %v880 = vsub.s32 2, %v879
        %v881 = vrot.slane %v871, %v880
        %v882 = vmul.f32 %v515, %v877
        %v883 = vmul.f32 %v515, %v881
        %886 = vrot.lane.b32.xlu0 %v882, 127
        %v887 = vpop.permute.xlu0 %886
        %888 = vrot.lane.b32.xlu0 %v883, 127
        %v889 = vpop.permute.xlu0 %888
        %v890 = vsel %vm476, %v887, %v889
        %v892 = vadd.f32 %v863, %v890
        %v893 = vlaneseq
        %v894 = vshrl.u32 %v893, 7
        %v895 = vsub.s32 3, %v894
        %v896 = vrot.slane %v804, %v895
        %v897 = vlaneseq
        %v898 = vshrl.u32 %v897, 7
        %v899 = vsub.s32 7, %v898
        %v900 = vrot.slane %v804, %v899
        %v903 = vlaneseq
        %v904 = vshrl.u32 %v903, 7
        %v905 = vsub.s32 3, %v904
        %v906 = vrot.slane %v896, %v905
        %v907 = vlaneseq
        %v908 = vshrl.u32 %v907, 7
        %v909 = vsub.s32 3, %v908
        %v910 = vrot.slane %v900, %v909
        %v911 = vmul.f32 %v548, %v906
        %v912 = vmul.f32 %v548, %v910
        %915 = vrot.lane.b32.xlu0 %v911, 127
        %v916 = vpop.permute.xlu0 %915
        %917 = vrot.lane.b32.xlu0 %v912, 127
        %v918 = vpop.permute.xlu0 %917
        %v919 = vsel %vm476, %v916, %v918
        %v921 = vadd.f32 %v892, %v919
        %v922 = vmul.f32 %v582, %v819
        %v923 = vmul.f32 %v582, %v823
        %926 = vrot.lane.b32.xlu0 %v922, 126
        %v927 = vpop.permute.xlu0 %926
        %928 = vrot.lane.b32.xlu0 %v923, 126
        %v929 = vpop.permute.xlu0 %928
        %v930 = vsel %vm592, %v927, %v929
        %v932 = vadd.f32 %v921, %v930
        %v933 = vmul.f32 %v598, %v848
        %v934 = vmul.f32 %v598, %v852
        %937 = vrot.lane.b32.xlu0 %v933, 126
        %v938 = vpop.permute.xlu0 %937
        %939 = vrot.lane.b32.xlu0 %v934, 126
        %v940 = vpop.permute.xlu0 %939
        %v941 = vsel %vm592, %v938, %v940
        %v943 = vadd.f32 %v932, %v941
        %v944 = vmul.f32 %v613, %v877
        %v945 = vmul.f32 %v613, %v881
        %948 = vrot.lane.b32.xlu0 %v944, 126
        %v949 = vpop.permute.xlu0 %948
        %950 = vrot.lane.b32.xlu0 %v945, 126
        %v951 = vpop.permute.xlu0 %950
        %v952 = vsel %vm592, %v949, %v951
        %v954 = vadd.f32 %v943, %v952
        %v955 = vmul.f32 %v628, %v906
        %v956 = vmul.f32 %v628, %v910
        %959 = vrot.lane.b32.xlu0 %v955, 126
        %v960 = vpop.permute.xlu0 %959
        %961 = vrot.lane.b32.xlu0 %v956, 126
        %v962 = vpop.permute.xlu0 %961
        %v963 = vsel %vm592, %v960, %v962
        %v965 = vadd.f32 %v954, %v963
        %v966 = vmul.f32 %v644, %v819
        %v967 = vmul.f32 %v644, %v823
        %970 = vrot.lane.b32.xlu0 %v966, 125
        %v971 = vpop.permute.xlu0 %970
        %972 = vrot.lane.b32.xlu0 %v967, 125
        %v973 = vpop.permute.xlu0 %972
        %v974 = vsel %vm654, %v971, %v973
        %v976 = vadd.f32 %v965, %v974
        %v977 = vmul.f32 %v660, %v848
        %v978 = vmul.f32 %v660, %v852
        %981 = vrot.lane.b32.xlu0 %v977, 125
        %v982 = vpop.permute.xlu0 %981
        %983 = vrot.lane.b32.xlu0 %v978, 125
        %v984 = vpop.permute.xlu0 %983
        %v985 = vsel %vm654, %v982, %v984
        %v987 = vadd.f32 %v976, %v985
        %v988 = vmul.f32 %v675, %v877
        %v989 = vmul.f32 %v675, %v881
        %992 = vrot.lane.b32.xlu0 %v988, 125
        %v993 = vpop.permute.xlu0 %992
        %994 = vrot.lane.b32.xlu0 %v989, 125
        %v995 = vpop.permute.xlu0 %994
        %v996 = vsel %vm654, %v993, %v995
        %v998 = vadd.f32 %v987, %v996
        %v999 = vmul.f32 %v690, %v906
        %v1000 = vmul.f32 %v690, %v910
        %1003 = vrot.lane.b32.xlu0 %v999, 125
        %v1004 = vpop.permute.xlu0 %1003
        %1005 = vrot.lane.b32.xlu0 %v1000, 125
        %v1006 = vpop.permute.xlu0 %1005
        %v1007 = vsel %vm654, %v1004, %v1006
        %v1009 = vadd.f32 %v998, %v1007
        %v1010 = vmul.f32 %v706, %v819
        %v1011 = vmul.f32 %v706, %v823
        %1014 = vrot.lane.b32.xlu0 %v1010, 124
        %v1015 = vpop.permute.xlu0 %1014
        %1016 = vrot.lane.b32.xlu0 %v1011, 124
        %v1017 = vpop.permute.xlu0 %1016
        %v1018 = vsel %vm716, %v1015, %v1017
        %v1020 = vadd.f32 %v1009, %v1018
        %v1021 = vmul.f32 %v722, %v848
        %v1022 = vmul.f32 %v722, %v852
        %1025 = vrot.lane.b32.xlu0 %v1021, 124
        %v1026 = vpop.permute.xlu0 %1025
        %1027 = vrot.lane.b32.xlu0 %v1022, 124
        %v1028 = vpop.permute.xlu0 %1027
        %v1029 = vsel %vm716, %v1026, %v1028
        %v1031 = vadd.f32 %v1020, %v1029
        %v1032 = vmul.f32 %v737, %v877
        %v1033 = vmul.f32 %v737, %v881
        %1036 = vrot.lane.b32.xlu0 %v1032, 124
        %v1037 = vpop.permute.xlu0 %1036
        %1038 = vrot.lane.b32.xlu0 %v1033, 124
        %v1039 = vpop.permute.xlu0 %1038
        %v1040 = vsel %vm716, %v1037, %v1039
        %v1042 = vadd.f32 %v1031, %v1040
        %v1043 = vmul.f32 %v752, %v906
        %v1044 = vmul.f32 %v752, %v910
        %1047 = vrot.lane.b32.xlu0 %v1043, 124
        %v1048 = vpop.permute.xlu0 %1047
        %1049 = vrot.lane.b32.xlu0 %v1044, 124
        %v1050 = vpop.permute.xlu0 %1049
        %v1051 = vsel %vm716, %v1048, %v1050
        %v1053 = vadd.f32 %v1042, %v1051
        %v1054 = vadd.f32 %v1053, %v768
        %s1055 = scalar_lea.vmem %s386, 8 [#allocation5]
        %1056 = vst [vmem:[%s1055] sm:$0xff] %v1054
        %s1057 = sand.u32 %s184, 1
        %s1058 = scalar_lea.sflag [#allocation6], %s1057
        %s1059 = sand.u32 %s184, 1
        %s1060 = smul.addr %s1059, 16
        %s1061 = scalar_lea.vmem [#allocation5], %s1060
        // Predicated region
        $region127: #{tpu_custom_call.1} parent=117 // pred_check
          %p1062 = pneg %p194
        $region128: #{tpu_custom_call.1} parent=117 // pred_check_branch
          %1064 = sbr.rel (%p1062) target = $region130
        $region129: #{tpu_custom_call.1} parent=117 // pred_region
          %s1065 = smul.u32 2, %s24
          %s1067 = ssub.s32 256, 256
          %1068 = vsyncadd %s1058, %s1067
          %s1069 = sadd.s32 %s25, %s1065
          %s1070 = smul.addr %s1069, 128
          %s1071 = scalar_lea.hbm %s6, %s1070
          %s1072 = sshll.u32 %s1061, 4
          %s1073 = int_to_ptr.vmem [resolvable:$true] %s1072
          %1078 = dma.vmem_to_hbm [thread:$0]  %s1073, 256, %s1071, %s1058, 128, 128, 8
        $region130: #{tpu_custom_call.1} parent=117 // pred_fallthru
          _
      $region118: #{tpu_custom_call.1} parent=5 // pred_fallthru
        _
      %p1079 = scmp.le.s32.totalorder 2, %s15
      // Predicated region
      $region131: #{tpu_custom_call.1} parent=5 // pred_check
        %p1080 = pneg %p1079
      $region132: #{tpu_custom_call.1} parent=5 // pred_check_branch
        %1082 = sbr.rel (%p1080) target = $region134
      $region133: #{tpu_custom_call.1} parent=5 // pred_region
        %s1083 = ssub.s32 %s15, 2
        // Predicated region
        $region135: #{tpu_custom_call.1} parent=133 // pred_check
          %p1084 = pneg %p200
        $region136: #{tpu_custom_call.1} parent=133 // pred_check_branch
          %1086 = sbr.rel (%p1084) target = $region138
        $region137: #{tpu_custom_call.1} parent=133 // pred_region
          %s1087 = sand.u32 %s185, 1
          %s1088 = scalar_lea.sflag [#allocation6], %s1087
          %s1089 = sand.u32 %s185, 1
          %s1090 = smul.addr %s1089, 16
          %s1091 = scalar_lea.vmem [#allocation5], %s1090
          %1092 = dma.done %s1088, 256
        $region138: #{tpu_custom_call.1} parent=133 // pred_fallthru
          _
      $region134: #{tpu_custom_call.1} parent=5 // pred_fallthru
        _
    $region6: #{tpu_custom_call.1} parent=1 // loop_footer
      %s19 = sadd.s32 1, %s15
    $region7: #{tpu_custom_call.1} parent=1 // loop_footer_branch
      %14 = sbr.rel target = $region3
    $region8: #{tpu_custom_call.1} parent=1 // loop_exit
      _
    %1093 = vsyncpa [#allocation6], 1
    %s1094 = scalar_lea.sflag [#allocation6], 1
    %1095 = vsyncpa %s1094, 1

</llo_original>
